<compile_context>
chip_gen: v5e
topology: v5e:2x2
jax: 0.10.0
libtpu: 0.0.40
codegen_flags: <defaults>
</compile_context>

<pallas_src>
import functools

import jax
import jax.numpy as jnp
import numpy as np
from jax import lax
from jax.experimental import pallas as pl
from jax.experimental.pallas import tpu as pltpu

BLOCK_B = 8          # images per grid step (multiple of 8 keeps every block sublane-aligned)

# static layout constants (28x28 single-channel input is implied by fc1 = Linear(16*7*7, 10))
H1P, W1P = 32, 30    # conv1 padded image rows (28+2 -> 32) / cols (28+2)
C1, W1_2P = 8, 16    # conv1 out-channels, padded pooled width (14 -> 16, incl. conv2's padding)
H2P = 16             # conv2 padded input rows (14+2)
C2, W2_2P = 16, 8    # conv2 out-channels, padded pooled width (7 -> 8)
NC1 = C1 * W1_2P     # 128 lanes: conv1 pooled output == conv2 padded input
NC2 = C2 * W2_2P     # 128 lanes: conv2 pooled output
NCLS_PAD = 128       # fc output lanes (10 -> 128, sliced in the wrapper)


# ---------------------------------------------------------------------------
# Fused Pallas kernel (one batch block per grid step)
# ---------------------------------------------------------------------------
def _cnn_fused_kernel(x_ref, w1_ref, b1_ref, s1_ref, w2_ref, b2_ref, s2_ref,
                      wfc_ref, fcb_ref, o_ref):
    B = o_ref.shape[0]
    M0 = s1_ref.shape[1]              # B*32 - 2 conv1 output rows (collapsed over images)
    M1 = s2_ref.shape[1]              # B*16 - 2 conv2 output rows
    R1 = s1_ref.shape[0] // 2         # B*16   conv2 padded-input rows per block
    R2 = s2_ref.shape[0] // 2         # 7*B    pooled rows per block (y2-major, image-minor)

    # ---- conv1: 3 banded matmuls over the collapsed (B*32, 30) image block; the weight's
    #      256 columns are [even-x half | odd-x half], each 128 = 8ch * (14+2 pad) lanes.
    h1 = jnp.dot(x_ref[pl.ds(0, M0), :], w1_ref[0], preferred_element_type=jnp.float32)
    for ky in (1, 2):
        h1 = h1 + jnp.dot(x_ref[pl.ds(ky, M0), :], w1_ref[ky],
                          preferred_element_type=jnp.float32)
    m1 = jnp.maximum(h1[:, :NC1], h1[:, NC1:]) + b1_ref[...]          # horizontal 2-max + bias
    # vertical 2-max + ReLU + row re-padding via one stacked 0/1 row-selection matmul
    p1 = jnp.dot(s1_ref[...], m1, preferred_element_type=jnp.float32)  # (2*R1, 128)
    a1 = jnp.maximum(jnp.maximum(p1[:R1, :], p1[R1:, :]), 0.0)
    # a1: (B*16, 128) == conv2's zero-padded input, row = b*16 + yp, lane = ci*16 + xp

    # ---- conv2: same structure, entirely on the in-VMEM activation
    h2 = jnp.dot(a1[0:M1, :], w2_ref[0], preferred_element_type=jnp.float32)
    for ky in (1, 2):
        h2 = h2 + jnp.dot(a1[ky:ky + M1, :], w2_ref[ky],
                          preferred_element_type=jnp.float32)
    m2 = jnp.maximum(h2[:, :NC2], h2[:, NC2:]) + b2_ref[...]
    p2 = jnp.dot(s2_ref[...], m2, preferred_element_type=jnp.float32)  # (2*R2, 128)
    feat = jnp.maximum(jnp.maximum(p2[:R2, :], p2[R2:, :]), 0.0)
    # feat: (7*B, 128), row = y2*B + b, lane = co*8 + x2  (x2 = 7 is zero padding)

    # ---- fc1: flatten folded into 7 contiguous aligned row-slices; weights pre-permuted/padded
    acc = jnp.dot(feat[0:B, :], wfc_ref[0], preferred_element_type=jnp.float32)
    for y2 in range(1, 7):
        acc = acc + jnp.dot(feat[y2 * B:(y2 + 1) * B, :], wfc_ref[y2],
                            preferred_element_type=jnp.float32)
    o_ref[...] = (acc + fcb_ref[...]).astype(o_ref.dtype)


# ---------------------------------------------------------------------------
# One-time parameter preparation (numpy, outside jit)
# ---------------------------------------------------------------------------
def prepare_params(params):
    w1 = np.asarray(params["conv1_w"], np.float32)   # (8, 1, 3, 3)
    b1 = np.asarray(params["conv1_b"], np.float32)
    w2 = np.asarray(params["conv2_w"], np.float32)   # (16, 8, 3, 3)
    b2 = np.asarray(params["conv2_b"], np.float32)
    fw = np.asarray(params["fc1_w"], np.float32)     # (ncls, 16*7*7)
    fb = np.asarray(params["fc1_b"], np.float32)
    ncls = fw.shape[0]

    # conv1: banded weights, even||odd output columns; output lane = co*16 + x2 + 1 so the
    # conv2 zero padding (width 14 -> 16) is built into the weight columns.
    w1cat = np.zeros((3, W1P, 2 * NC1), np.float32)
    b1row = np.zeros((1, NC1), np.float32)
    x2 = np.arange(14)
    for ky in range(3):
        for kx in range(3):
            for co in range(C1):
                v = w1[co, 0, ky, kx]
                w1cat[ky, 2 * x2 + kx, co * W1_2P + x2 + 1] = v            # even conv cols
                w1cat[ky, 2 * x2 + 1 + kx, NC1 + co * W1_2P + x2 + 1] = v  # odd conv cols
    for co in range(C1):
        b1row[0, co * W1_2P + 1: co * W1_2P + 15] = b1[co]

    # conv2: input lane = ci*16 + xp, output lane = co*8 + x2 (x2 = 7 is zero padding)
    w2cat = np.zeros((3, NC1, 2 * NC2), np.float32)
    b2row = np.zeros((1, NC2), np.float32)
    x2 = np.arange(7)
    for ky in range(3):
        for kx in range(3):
            for ci in range(C1):
                for co in range(C2):
                    v = w2[co, ci, ky, kx]
                    w2cat[ky, ci * W1_2P + 2 * x2 + kx, co * W2_2P + x2] = v
                    w2cat[ky, ci * W1_2P + 2 * x2 + 1 + kx, NC2 + co * W2_2P + x2] = v
    for co in range(C2):
        b2row[0, co * W2_2P: co * W2_2P + 7] = b2[co]

    # fc1: PyTorch feature index c*49 + y*7 + x  ->  kernel order (y2, co, x2pad); pad N to 128.
    wfc = np.zeros((7, NC2, NCLS_PAD), np.float32)
    for y2i in range(7):
        for co in range(C2):
            for x2i in range(7):
                wfc[y2i, co * W2_2P + x2i, :ncls] = fw[:, co * 49 + y2i * 7 + x2i]
    fcb = np.zeros((1, NCLS_PAD), np.float32)
    fcb[0, :ncls] = fb

    # 0/1 row-selection matrices (stacked even||odd) for the vertical max-pools; they also
    # re-insert the zero rows of conv2's padded input (layer 1) and order pooled rows y2-major
    # (layer 2) so the FC slices are contiguous.
    B = BLOCK_B
    m0 = B * H1P - 2
    m1 = B * H2P - 2
    s1 = np.zeros((2 * B * H2P, m0), np.float32)
    s2 = np.zeros((2 * 7 * B, m1), np.float32)
    for b in range(B):
        for y in range(14):
            s1[b * H2P + y + 1, b * H1P + 2 * y] = 1.0                 # even rows
            s1[B * H2P + b * H2P + y + 1, b * H1P + 2 * y + 1] = 1.0   # odd rows
        for y in range(7):
            s2[y * B + b, b * H2P + 2 * y] = 1.0
            s2[7 * B + y * B + b, b * H2P + 2 * y + 1] = 1.0

    return {"w1": w1cat, "b1": b1row, "s1": s1,
            "w2": w2cat, "b2": b2row, "s2": s2,
            "wfc": wfc, "fcb": fcb}


# ---------------------------------------------------------------------------
# Model
# ---------------------------------------------------------------------------
def init_params(key, num_classes=10):
    k1, k2, k3, k4, k5, k6 = jax.random.split(key, 6)
    return {
        "conv1_w": jax.random.normal(k1, (8, 1, 3, 3), jnp.float32) * 0.2,
        "conv1_b": jax.random.normal(k2, (8,), jnp.float32) * 0.1,
        "conv2_w": jax.random.normal(k3, (16, 8, 3, 3), jnp.float32) * 0.1,
        "conv2_b": jax.random.normal(k4, (16,), jnp.float32) * 0.1,
        "fc1_w": jax.random.normal(k5, (num_classes, 16 * 7 * 7), jnp.float32) * 0.05,
        "fc1_b": jax.random.normal(k6, (num_classes,), jnp.float32) * 0.1,
    }


@functools.partial(jax.jit, static_argnames=("num_classes",))
def cnn_forward(prep, x_nchw, num_classes=10):
    n = x_nchw.shape[0]
    B = BLOCK_B
    n_pad = ((n + B - 1) // B) * B
    # zero-pad: batch -> multiple of B, rows 28 -> 32 (1 conv pad + 3 extra), cols 28 -> 30
    x = jnp.pad(x_nchw[:, 0], ((0, n_pad - n), (1, H1P - 29), (1, 1)))   # (n_pad, 32, 30)
    x2d = x.reshape(n_pad * H1P, W1P)                                    # collapsed image rows

    logits = pl.pallas_call(
        _cnn_fused_kernel,
        out_shape=jax.ShapeDtypeStruct((n_pad, NCLS_PAD), jnp.float32),
        grid=(n_pad // B,),
        in_specs=[
            pl.BlockSpec((B * H1P, W1P), lambda i: (i, 0)),
            pl.BlockSpec((3, W1P, 2 * NC1), lambda i: (0, 0, 0)),
            pl.BlockSpec((1, NC1), lambda i: (0, 0)),
            pl.BlockSpec((2 * B * H2P, B * H1P - 2), lambda i: (0, 0)),
            pl.BlockSpec((3, NC1, 2 * NC2), lambda i: (0, 0, 0)),
            pl.BlockSpec((1, NC2), lambda i: (0, 0)),
            pl.BlockSpec((2 * 7 * B, B * H2P - 2), lambda i: (0, 0)),
            pl.BlockSpec((7, NC2, NCLS_PAD), lambda i: (0, 0, 0)),
            pl.BlockSpec((1, NCLS_PAD), lambda i: (0, 0)),
        ],
        out_specs=pl.BlockSpec((B, NCLS_PAD), lambda i: (i, 0)),
        compiler_params=pltpu.CompilerParams(dimension_semantics=("parallel",)),
    )(x2d, prep["w1"], prep["b1"], prep["s1"],
      prep["w2"], prep["b2"], prep["s2"], prep["wfc"], prep["fcb"])
    return logits[:n, :num_classes]


def cnn_forward_ref(params, x):
    # pure-JAX reference mirroring the PyTorch module (NCHW throughout)
    y = lax.conv_general_dilated(x, params["conv1_w"], (1, 1), ((1, 1), (1, 1)),
                                 dimension_numbers=("NCHW", "OIHW", "NCHW"))
    y = jax.nn.relu(y + params["conv1_b"].reshape(1, -1, 1, 1))
    y = lax.reduce_window(y, -jnp.inf, lax.max, (1, 1, 2, 2), (1, 1, 2, 2), "VALID")
    y = lax.conv_general_dilated(y, params["conv2_w"], (1, 1), ((1, 1), (1, 1)),
                                 dimension_numbers=("NCHW", "OIHW", "NCHW"))
    y = jax.nn.relu(y + params["conv2_b"].reshape(1, -1, 1, 1))
    y = lax.reduce_window(y, -jnp.inf, lax.max, (1, 1, 2, 2), (1, 1, 2, 2), "VALID")
    y = y.reshape(y.shape[0], -1)
    return y @ params["fc1_w"].T + params["fc1_b"]


if __name__ == "__main__":
    key = jax.random.PRNGKey(0)
    pkey, xkey = jax.random.split(key)
    params = init_params(pkey, num_classes=10)
    prep = prepare_params(params)            # one-time weight folding / permutation
    # 28x28 spatial is implied by fc1 = Linear(16*7*7, 10) after two 2x2 pools.
    x = jax.random.normal(xkey, (2, 1, 28, 28), jnp.float32)

    out = jax.block_until_ready(cnn_forward(prep, x, num_classes=10))
    assert out.shape == (2, 10), out.shape

    ref = cnn_forward_ref(params, x)
    np.testing.assert_allclose(np.asarray(out), np.asarray(ref), rtol=1e-4, atol=1e-4)
    print("KERNEL_OK")
</pallas_src>

<mosaic_0001>
module attributes {stable_mosaic.version = 11 : i64} {
  func.func @_cnn_fused_kernel(%arg0: i32, %arg1: memref<256x30xf32, #tpu.memory_space<vmem>>, %arg2: memref<3x30x256xf32, #tpu.memory_space<vmem>>, %arg3: memref<1x128xf32, #tpu.memory_space<vmem>>, %arg4: memref<256x254xf32, #tpu.memory_space<vmem>>, %arg5: memref<3x128x256xf32, #tpu.memory_space<vmem>>, %arg6: memref<1x128xf32, #tpu.memory_space<vmem>>, %arg7: memref<112x126xf32, #tpu.memory_space<vmem>>, %arg8: memref<7x128x128xf32, #tpu.memory_space<vmem>>, %arg9: memref<1x128xf32, #tpu.memory_space<vmem>>, %arg10: memref<8x128xf32, #tpu.memory_space<vmem>>) attributes {dimension_semantics = [#tpu.dimension_semantics<parallel>], iteration_bounds = array<i64: 1>, scalar_prefetch = 0 : i64, scratch_operands = 0 : i64, tpu.core_type = #tpu.core_type<tc>, window_params = [{transform_indices = @transform_0, window_bounds = array<i64: 256, 30>}, {pipeline_mode = #tpu.pipeline_mode<synchronous>, transform_indices = @transform_1, window_bounds = array<i64: 3, 30, 256>}, {pipeline_mode = #tpu.pipeline_mode<synchronous>, transform_indices = @transform_2, window_bounds = array<i64: 1, 128>}, {pipeline_mode = #tpu.pipeline_mode<synchronous>, transform_indices = @transform_3, window_bounds = array<i64: 256, 254>}, {pipeline_mode = #tpu.pipeline_mode<synchronous>, transform_indices = @transform_4, window_bounds = array<i64: 3, 128, 256>}, {pipeline_mode = #tpu.pipeline_mode<synchronous>, transform_indices = @transform_5, window_bounds = array<i64: 1, 128>}, {pipeline_mode = #tpu.pipeline_mode<synchronous>, transform_indices = @transform_6, window_bounds = array<i64: 112, 126>}, {pipeline_mode = #tpu.pipeline_mode<synchronous>, transform_indices = @transform_7, window_bounds = array<i64: 7, 128, 128>}, {pipeline_mode = #tpu.pipeline_mode<synchronous>, transform_indices = @transform_8, window_bounds = array<i64: 1, 128>}, {transform_indices = @transform_9, window_bounds = array<i64: 8, 128>}]} {
    %c0 = arith.constant 0 : index
    %c0_0 = arith.constant 0 : index
    %0 = vector.load %arg1[%c0, %c0_0] : memref<256x30xf32, #tpu.memory_space<vmem>>, vector<254x30xf32>
    %c0_1 = arith.constant 0 : index
    %c0_2 = arith.constant 0 : index
    %c0_3 = arith.constant 0 : index
    %1 = vector.load %arg2[%c0_1, %c0_2, %c0_3] : memref<3x30x256xf32, #tpu.memory_space<vmem>>, vector<1x30x256xf32>
    %2 = vector.shape_cast %1 : vector<1x30x256xf32> to vector<30x256xf32>
    %cst = arith.constant dense<0.000000e+00> : vector<254x256xf32>
    %3 = tpu.matmul %0, %2, %cst {dimension_numbers = #tpu.dot_dimension_numbers<[1], [0], [0], [1], [0, 0, 1, 1], [], []>} : vector<254x30xf32>, vector<30x256xf32>, vector<254x256xf32> -> vector<254x256xf32>
    %c1 = arith.constant 1 : index
    %c0_4 = arith.constant 0 : index
    %4 = vector.load %arg1[%c1, %c0_4] : memref<256x30xf32, #tpu.memory_space<vmem>>, vector<254x30xf32>
    %c1_5 = arith.constant 1 : index
    %c0_6 = arith.constant 0 : index
    %c0_7 = arith.constant 0 : index
    %5 = vector.load %arg2[%c1_5, %c0_6, %c0_7] : memref<3x30x256xf32, #tpu.memory_space<vmem>>, vector<1x30x256xf32>
    %6 = vector.shape_cast %5 : vector<1x30x256xf32> to vector<30x256xf32>
    %cst_8 = arith.constant dense<0.000000e+00> : vector<254x256xf32>
    %7 = tpu.matmul %4, %6, %cst_8 {dimension_numbers = #tpu.dot_dimension_numbers<[1], [0], [0], [1], [0, 0, 1, 1], [], []>} : vector<254x30xf32>, vector<30x256xf32>, vector<254x256xf32> -> vector<254x256xf32>
    %8 = arith.addf %3, %7 : vector<254x256xf32>
    %c2 = arith.constant 2 : index
    %c0_9 = arith.constant 0 : index
    %9 = vector.load %arg1[%c2, %c0_9] : memref<256x30xf32, #tpu.memory_space<vmem>>, vector<254x30xf32>
    %c2_10 = arith.constant 2 : index
    %c0_11 = arith.constant 0 : index
    %c0_12 = arith.constant 0 : index
    %10 = vector.load %arg2[%c2_10, %c0_11, %c0_12] : memref<3x30x256xf32, #tpu.memory_space<vmem>>, vector<1x30x256xf32>
    %11 = vector.shape_cast %10 : vector<1x30x256xf32> to vector<30x256xf32>
    %cst_13 = arith.constant dense<0.000000e+00> : vector<254x256xf32>
    %12 = tpu.matmul %9, %11, %cst_13 {dimension_numbers = #tpu.dot_dimension_numbers<[1], [0], [0], [1], [0, 0, 1, 1], [], []>} : vector<254x30xf32>, vector<30x256xf32>, vector<254x256xf32> -> vector<254x256xf32>
    %13 = arith.addf %8, %12 : vector<254x256xf32>
    %14 = vector.extract_strided_slice %13 {offsets = [0, 0], sizes = [254, 128], strides = [1, 1]} : vector<254x256xf32> to vector<254x128xf32>
    %15 = vector.extract_strided_slice %13 {offsets = [0, 128], sizes = [254, 128], strides = [1, 1]} : vector<254x256xf32> to vector<254x128xf32>
    %16 = arith.maximumf %14, %15 : vector<254x128xf32>
    %c0_14 = arith.constant 0 : index
    %c0_15 = arith.constant 0 : index
    %17 = vector.load %arg3[%c0_14, %c0_15] : memref<1x128xf32, #tpu.memory_space<vmem>>, vector<1x128xf32>
    %18 = vector.broadcast %17 : vector<1x128xf32> to vector<254x128xf32>
    %19 = arith.addf %16, %18 : vector<254x128xf32>
    %c0_16 = arith.constant 0 : index
    %c0_17 = arith.constant 0 : index
    %20 = vector.load %arg4[%c0_16, %c0_17] : memref<256x254xf32, #tpu.memory_space<vmem>>, vector<256x254xf32>
    %cst_18 = arith.constant dense<0.000000e+00> : vector<256x128xf32>
    %21 = tpu.matmul %20, %19, %cst_18 {dimension_numbers = #tpu.dot_dimension_numbers<[1], [0], [0], [1], [0, 0, 1, 1], [], []>} : vector<256x254xf32>, vector<254x128xf32>, vector<256x128xf32> -> vector<256x128xf32>
    %22 = vector.extract_strided_slice %21 {offsets = [0, 0], sizes = [128, 128], strides = [1, 1]} : vector<256x128xf32> to vector<128x128xf32>
    %23 = vector.extract_strided_slice %21 {offsets = [128, 0], sizes = [128, 128], strides = [1, 1]} : vector<256x128xf32> to vector<128x128xf32>
    %24 = arith.maximumf %22, %23 : vector<128x128xf32>
    %cst_19 = arith.constant 0.000000e+00 : f32
    %25 = vector.broadcast %cst_19 : f32 to vector<128x128xf32>
    %26 = arith.maximumf %24, %25 : vector<128x128xf32>
    %27 = vector.extract_strided_slice %26 {offsets = [0, 0], sizes = [126, 128], strides = [1, 1]} : vector<128x128xf32> to vector<126x128xf32>
    %c0_20 = arith.constant 0 : index
    %c0_21 = arith.constant 0 : index
    %c0_22 = arith.constant 0 : index
    %28 = vector.load %arg5[%c0_20, %c0_21, %c0_22] : memref<3x128x256xf32, #tpu.memory_space<vmem>>, vector<1x128x256xf32>
    %29 = vector.shape_cast %28 : vector<1x128x256xf32> to vector<128x256xf32>
    %cst_23 = arith.constant dense<0.000000e+00> : vector<126x256xf32>
    %30 = tpu.matmul %27, %29, %cst_23 {dimension_numbers = #tpu.dot_dimension_numbers<[1], [0], [0], [1], [0, 0, 1, 1], [], []>} : vector<126x128xf32>, vector<128x256xf32>, vector<126x256xf32> -> vector<126x256xf32>
    %31 = vector.extract_strided_slice %26 {offsets = [1, 0], sizes = [126, 128], strides = [1, 1]} : vector<128x128xf32> to vector<126x128xf32>
    %c1_24 = arith.constant 1 : index
    %c0_25 = arith.constant 0 : index
    %c0_26 = arith.constant 0 : index
    %32 = vector.load %arg5[%c1_24, %c0_25, %c0_26] : memref<3x128x256xf32, #tpu.memory_space<vmem>>, vector<1x128x256xf32>
    %33 = vector.shape_cast %32 : vector<1x128x256xf32> to vector<128x256xf32>
    %cst_27 = arith.constant dense<0.000000e+00> : vector<126x256xf32>
    %34 = tpu.matmul %31, %33, %cst_27 {dimension_numbers = #tpu.dot_dimension_numbers<[1], [0], [0], [1], [0, 0, 1, 1], [], []>} : vector<126x128xf32>, vector<128x256xf32>, vector<126x256xf32> -> vector<126x256xf32>
    %35 = arith.addf %30, %34 : vector<126x256xf32>
    %36 = vector.extract_strided_slice %26 {offsets = [2, 0], sizes = [126, 128], strides = [1, 1]} : vector<128x128xf32> to vector<126x128xf32>
    %c2_28 = arith.constant 2 : index
    %c0_29 = arith.constant 0 : index
    %c0_30 = arith.constant 0 : index
    %37 = vector.load %arg5[%c2_28, %c0_29, %c0_30] : memref<3x128x256xf32, #tpu.memory_space<vmem>>, vector<1x128x256xf32>
    %38 = vector.shape_cast %37 : vector<1x128x256xf32> to vector<128x256xf32>
    %cst_31 = arith.constant dense<0.000000e+00> : vector<126x256xf32>
    %39 = tpu.matmul %36, %38, %cst_31 {dimension_numbers = #tpu.dot_dimension_numbers<[1], [0], [0], [1], [0, 0, 1, 1], [], []>} : vector<126x128xf32>, vector<128x256xf32>, vector<126x256xf32> -> vector<126x256xf32>
    %40 = arith.addf %35, %39 : vector<126x256xf32>
    %41 = vector.extract_strided_slice %40 {offsets = [0, 0], sizes = [126, 128], strides = [1, 1]} : vector<126x256xf32> to vector<126x128xf32>
    %42 = vector.extract_strided_slice %40 {offsets = [0, 128], sizes = [126, 128], strides = [1, 1]} : vector<126x256xf32> to vector<126x128xf32>
    %43 = arith.maximumf %41, %42 : vector<126x128xf32>
    %c0_32 = arith.constant 0 : index
    %c0_33 = arith.constant 0 : index
    %44 = vector.load %arg6[%c0_32, %c0_33] : memref<1x128xf32, #tpu.memory_space<vmem>>, vector<1x128xf32>
    %45 = vector.broadcast %44 : vector<1x128xf32> to vector<126x128xf32>
    %46 = arith.addf %43, %45 : vector<126x128xf32>
    %c0_34 = arith.constant 0 : index
    %c0_35 = arith.constant 0 : index
    %47 = vector.load %arg7[%c0_34, %c0_35] : memref<112x126xf32, #tpu.memory_space<vmem>>, vector<112x126xf32>
    %cst_36 = arith.constant dense<0.000000e+00> : vector<112x128xf32>
    %48 = tpu.matmul %47, %46, %cst_36 {dimension_numbers = #tpu.dot_dimension_numbers<[1], [0], [0], [1], [0, 0, 1, 1], [], []>} : vector<112x126xf32>, vector<126x128xf32>, vector<112x128xf32> -> vector<112x128xf32>
    %49 = vector.extract_strided_slice %48 {offsets = [0, 0], sizes = [56, 128], strides = [1, 1]} : vector<112x128xf32> to vector<56x128xf32>
    %50 = vector.extract_strided_slice %48 {offsets = [56, 0], sizes = [56, 128], strides = [1, 1]} : vector<112x128xf32> to vector<56x128xf32>
    %51 = arith.maximumf %49, %50 : vector<56x128xf32>
    %cst_37 = arith.constant 0.000000e+00 : f32
    %52 = vector.broadcast %cst_37 : f32 to vector<56x128xf32>
    %53 = arith.maximumf %51, %52 : vector<56x128xf32>
    %54 = vector.extract_strided_slice %53 {offsets = [0, 0], sizes = [8, 128], strides = [1, 1]} : vector<56x128xf32> to vector<8x128xf32>
    %c0_38 = arith.constant 0 : index
    %c0_39 = arith.constant 0 : index
    %c0_40 = arith.constant 0 : index
    %55 = vector.load %arg8[%c0_38, %c0_39, %c0_40] : memref<7x128x128xf32, #tpu.memory_space<vmem>>, vector<1x128x128xf32>
    %56 = vector.shape_cast %55 : vector<1x128x128xf32> to vector<128x128xf32>
    %cst_41 = arith.constant dense<0.000000e+00> : vector<8x128xf32>
    %57 = tpu.matmul %54, %56, %cst_41 {dimension_numbers = #tpu.dot_dimension_numbers<[1], [0], [0], [1], [0, 0, 1, 1], [], []>} : vector<8x128xf32>, vector<128x128xf32>, vector<8x128xf32> -> vector<8x128xf32>
    %58 = vector.extract_strided_slice %53 {offsets = [8, 0], sizes = [8, 128], strides = [1, 1]} : vector<56x128xf32> to vector<8x128xf32>
    %c1_42 = arith.constant 1 : index
    %c0_43 = arith.constant 0 : index
    %c0_44 = arith.constant 0 : index
    %59 = vector.load %arg8[%c1_42, %c0_43, %c0_44] : memref<7x128x128xf32, #tpu.memory_space<vmem>>, vector<1x128x128xf32>
    %60 = vector.shape_cast %59 : vector<1x128x128xf32> to vector<128x128xf32>
    %cst_45 = arith.constant dense<0.000000e+00> : vector<8x128xf32>
    %61 = tpu.matmul %58, %60, %cst_45 {dimension_numbers = #tpu.dot_dimension_numbers<[1], [0], [0], [1], [0, 0, 1, 1], [], []>} : vector<8x128xf32>, vector<128x128xf32>, vector<8x128xf32> -> vector<8x128xf32>
    %62 = arith.addf %57, %61 : vector<8x128xf32>
    %63 = vector.extract_strided_slice %53 {offsets = [16, 0], sizes = [8, 128], strides = [1, 1]} : vector<56x128xf32> to vector<8x128xf32>
    %c2_46 = arith.constant 2 : index
    %c0_47 = arith.constant 0 : index
    %c0_48 = arith.constant 0 : index
    %64 = vector.load %arg8[%c2_46, %c0_47, %c0_48] : memref<7x128x128xf32, #tpu.memory_space<vmem>>, vector<1x128x128xf32>
    %65 = vector.shape_cast %64 : vector<1x128x128xf32> to vector<128x128xf32>
    %cst_49 = arith.constant dense<0.000000e+00> : vector<8x128xf32>
    %66 = tpu.matmul %63, %65, %cst_49 {dimension_numbers = #tpu.dot_dimension_numbers<[1], [0], [0], [1], [0, 0, 1, 1], [], []>} : vector<8x128xf32>, vector<128x128xf32>, vector<8x128xf32> -> vector<8x128xf32>
    %67 = arith.addf %62, %66 : vector<8x128xf32>
    %68 = vector.extract_strided_slice %53 {offsets = [24, 0], sizes = [8, 128], strides = [1, 1]} : vector<56x128xf32> to vector<8x128xf32>
    %c3 = arith.constant 3 : index
    %c0_50 = arith.constant 0 : index
    %c0_51 = arith.constant 0 : index
    %69 = vector.load %arg8[%c3, %c0_50, %c0_51] : memref<7x128x128xf32, #tpu.memory_space<vmem>>, vector<1x128x128xf32>
    %70 = vector.shape_cast %69 : vector<1x128x128xf32> to vector<128x128xf32>
    %cst_52 = arith.constant dense<0.000000e+00> : vector<8x128xf32>
    %71 = tpu.matmul %68, %70, %cst_52 {dimension_numbers = #tpu.dot_dimension_numbers<[1], [0], [0], [1], [0, 0, 1, 1], [], []>} : vector<8x128xf32>, vector<128x128xf32>, vector<8x128xf32> -> vector<8x128xf32>
    %72 = arith.addf %67, %71 : vector<8x128xf32>
    %73 = vector.extract_strided_slice %53 {offsets = [32, 0], sizes = [8, 128], strides = [1, 1]} : vector<56x128xf32> to vector<8x128xf32>
    %c4 = arith.constant 4 : index
    %c0_53 = arith.constant 0 : index
    %c0_54 = arith.constant 0 : index
    %74 = vector.load %arg8[%c4, %c0_53, %c0_54] : memref<7x128x128xf32, #tpu.memory_space<vmem>>, vector<1x128x128xf32>
    %75 = vector.shape_cast %74 : vector<1x128x128xf32> to vector<128x128xf32>
    %cst_55 = arith.constant dense<0.000000e+00> : vector<8x128xf32>
    %76 = tpu.matmul %73, %75, %cst_55 {dimension_numbers = #tpu.dot_dimension_numbers<[1], [0], [0], [1], [0, 0, 1, 1], [], []>} : vector<8x128xf32>, vector<128x128xf32>, vector<8x128xf32> -> vector<8x128xf32>
    %77 = arith.addf %72, %76 : vector<8x128xf32>
    %78 = vector.extract_strided_slice %53 {offsets = [40, 0], sizes = [8, 128], strides = [1, 1]} : vector<56x128xf32> to vector<8x128xf32>
    %c5 = arith.constant 5 : index
    %c0_56 = arith.constant 0 : index
    %c0_57 = arith.constant 0 : index
    %79 = vector.load %arg8[%c5, %c0_56, %c0_57] : memref<7x128x128xf32, #tpu.memory_space<vmem>>, vector<1x128x128xf32>
    %80 = vector.shape_cast %79 : vector<1x128x128xf32> to vector<128x128xf32>
    %cst_58 = arith.constant dense<0.000000e+00> : vector<8x128xf32>
    %81 = tpu.matmul %78, %80, %cst_58 {dimension_numbers = #tpu.dot_dimension_numbers<[1], [0], [0], [1], [0, 0, 1, 1], [], []>} : vector<8x128xf32>, vector<128x128xf32>, vector<8x128xf32> -> vector<8x128xf32>
    %82 = arith.addf %77, %81 : vector<8x128xf32>
    %83 = vector.extract_strided_slice %53 {offsets = [48, 0], sizes = [8, 128], strides = [1, 1]} : vector<56x128xf32> to vector<8x128xf32>
    %c6 = arith.constant 6 : index
    %c0_59 = arith.constant 0 : index
    %c0_60 = arith.constant 0 : index
    %84 = vector.load %arg8[%c6, %c0_59, %c0_60] : memref<7x128x128xf32, #tpu.memory_space<vmem>>, vector<1x128x128xf32>
    %85 = vector.shape_cast %84 : vector<1x128x128xf32> to vector<128x128xf32>
    %cst_61 = arith.constant dense<0.000000e+00> : vector<8x128xf32>
    %86 = tpu.matmul %83, %85, %cst_61 {dimension_numbers = #tpu.dot_dimension_numbers<[1], [0], [0], [1], [0, 0, 1, 1], [], []>} : vector<8x128xf32>, vector<128x128xf32>, vector<8x128xf32> -> vector<8x128xf32>
    %87 = arith.addf %82, %86 : vector<8x128xf32>
    %c0_62 = arith.constant 0 : index
    %c0_63 = arith.constant 0 : index
    %88 = vector.load %arg9[%c0_62, %c0_63] : memref<1x128xf32, #tpu.memory_space<vmem>>, vector<1x128xf32>
    %89 = vector.broadcast %88 : vector<1x128xf32> to vector<8x128xf32>
    %90 = arith.addf %87, %89 : vector<8x128xf32>
    %c0_64 = arith.constant 0 : index
    %c0_65 = arith.constant 0 : index
    %91 = vector.load %arg10[%c0_64, %c0_65] : memref<8x128xf32, #tpu.memory_space<vmem>>, vector<8x128xf32>
    tpu.vector_store %arg10[%c0_64, %c0_65], %90 {strides = array<i32>} : memref<8x128xf32, #tpu.memory_space<vmem>>, vector<8x128xf32>,
    return
  }
  func.func @transform_0(%arg0: i32) -> (i32, i32) {
    %c0_i32 = arith.constant 0 : i32
    %c0_i32_0 = arith.constant 0 : i32
    return %arg0, %c0_i32 : i32, i32
  }
  func.func @transform_1(%arg0: i32) -> (i32, i32, i32) {
    %c0_i32 = arith.constant 0 : i32
    %c0_i32_0 = arith.constant 0 : i32
    %c0_i32_1 = arith.constant 0 : i32
    %c0_i32_2 = arith.constant 0 : i32
    return %c0_i32, %c0_i32_0, %c0_i32_1 : i32, i32, i32
  }
  func.func @transform_2(%arg0: i32) -> (i32, i32) {
    %c0_i32 = arith.constant 0 : i32
    %c0_i32_0 = arith.constant 0 : i32
    %c0_i32_1 = arith.constant 0 : i32
    return %c0_i32, %c0_i32_0 : i32, i32
  }
  func.func @transform_3(%arg0: i32) -> (i32, i32) {
    %c0_i32 = arith.constant 0 : i32
    %c0_i32_0 = arith.constant 0 : i32
    %c0_i32_1 = arith.constant 0 : i32
    return %c0_i32, %c0_i32_0 : i32, i32
  }
  func.func @transform_4(%arg0: i32) -> (i32, i32, i32) {
    %c0_i32 = arith.constant 0 : i32
    %c0_i32_0 = arith.constant 0 : i32
    %c0_i32_1 = arith.constant 0 : i32
    %c0_i32_2 = arith.constant 0 : i32
    return %c0_i32, %c0_i32_0, %c0_i32_1 : i32, i32, i32
  }
  func.func @transform_5(%arg0: i32) -> (i32, i32) {
    %c0_i32 = arith.constant 0 : i32
    %c0_i32_0 = arith.constant 0 : i32
    %c0_i32_1 = arith.constant 0 : i32
    return %c0_i32, %c0_i32_0 : i32, i32
  }
  func.func @transform_6(%arg0: i32) -> (i32, i32) {
    %c0_i32 = arith.constant 0 : i32
    %c0_i32_0 = arith.constant 0 : i32
    %c0_i32_1 = arith.constant 0 : i32
    return %c0_i32, %c0_i32_0 : i32, i32
  }
  func.func @transform_7(%arg0: i32) -> (i32, i32, i32) {
    %c0_i32 = arith.constant 0 : i32
    %c0_i32_0 = arith.constant 0 : i32
    %c0_i32_1 = arith.constant 0 : i32
    %c0_i32_2 = arith.constant 0 : i32
    return %c0_i32, %c0_i32_0, %c0_i32_1 : i32, i32, i32
  }
  func.func @transform_8(%arg0: i32) -> (i32, i32) {
    %c0_i32 = arith.constant 0 : i32
    %c0_i32_0 = arith.constant 0 : i32
    %c0_i32_1 = arith.constant 0 : i32
    return %c0_i32, %c0_i32_0 : i32, i32
  }
  func.func @transform_9(%arg0: i32) -> (i32, i32) {
    %c0_i32 = arith.constant 0 : i32
    %c0_i32_0 = arith.constant 0 : i32
    return %arg0, %c0_i32 : i32, i32
  }
}

</mosaic_0001>

<llo_original>
// kernel: cnn_forward.1
$region0: #{cnn_forward.1}
  #allocation0 [shape = 'u32[]', space=smem, size = 0x4, offset = 0x4, fixed_abs, tag = 'smem constant byte address 0x4 - core index']
  #allocation1 [shape = 'u32[72,128]{1,0:T(1,128)}', space=vmem, size = 0x9000, scoped, tag = 'internal scratch']
  %s0 = inlined_call_operand.vmem [shape: f32[256,30], index: 0, kind: input, shape index: {}]
  %s1 = inlined_call_operand.hbm [shape: f32[3,30,256], index: 1, kind: input, shape index: {}]
  %s2 = inlined_call_operand.vmem [shape: f32[1,128], index: 2, kind: input, shape index: {}]
  %s3 = inlined_call_operand.vmem [shape: f32[256,254], index: 3, kind: input, shape index: {}]
  %s4 = inlined_call_operand.hbm [shape: f32[3,128,256], index: 4, kind: input, shape index: {}]
  %s5 = inlined_call_operand.vmem [shape: f32[1,128], index: 5, kind: input, shape index: {}]
  %s6 = inlined_call_operand.hbm [shape: f32[112,126], index: 6, kind: input, shape index: {}]
  %s7 = inlined_call_operand.hbm [shape: f32[7,128,128], index: 7, kind: input, shape index: {}]
  %s8 = inlined_call_operand.vmem [shape: f32[1,128], index: 8, kind: input, shape index: {}]
  %s9 = inlined_call_operand.vmem [shape: f32[8,128], index: 9, kind: output, shape index: {}]
  %s10 = sld [smem:[#allocation0]]
  $region62: #{cnn_forward.1} parent=0
    _
  %s12 = ssub.s32 1, %s10
  %s13 = scalar_select 0, %s12, %s10
  $region1: #{cnn_forward.1} parent=0
    #allocation2 [shape = 'u8[98304]{0}', space=vmem, size = 0x18000, scoped, tag = 'input window, operand 1, single buffered']
    #allocation3 [shape = 's32[1]{0}', space=sflag, size = 0x4, scoped, tag = 'scoped memory for cnn_forward.1']
    #allocation4 [shape = 'u8[393216]{0}', space=vmem, size = 0x60000, scoped, tag = 'input window, operand 4, single buffered']
    #allocation5 [shape = 's32[1]{0}', space=sflag, size = 0x4, scoped, tag = 'scoped memory for cnn_forward.1']
    #allocation6 [shape = 'u8[57344]{0}', space=vmem, size = 0xe000, scoped, tag = 'input window, operand 6, single buffered']
    #allocation7 [shape = 'u8[458752]{0}', space=vmem, size = 0x70000, scoped, tag = 'input window, operand 7, single buffered']
    #allocation8 [shape = 's32[1]{0}', space=sflag, size = 0x4, scoped, tag = 'scoped memory for cnn_forward.1']
    %14 = vsyncpa [#allocation3], 0
    %15 = vsyncpa [#allocation5], 0
    %16 = vsyncpa [#allocation8], 0
    // Predicated region
    $region2: #{cnn_forward.1} parent=1 // pred_check
      _
    $region3: #{cnn_forward.1} parent=1 // pred_check_branch
      %18 = sbr.rel (0) target = $region5
    $region4: #{cnn_forward.1} parent=1 // pred_region
      _
    $region5: #{cnn_forward.1} parent=1 // pred_fallthru
      _
    // Predicated region
    $region6: #{cnn_forward.1} parent=1 // pred_check
      _
    $region7: #{cnn_forward.1} parent=1 // pred_check_branch
      %20 = sbr.rel (0) target = $region9
    $region8: #{cnn_forward.1} parent=1 // pred_region
      %22 = vsyncadd [#allocation3], 0
      %s23 = sshll.u32 %s1, 4
      %s24 = int_to_ptr.hbm [resolvable:$true] %s23
      %s25 = sshll.u32 [#allocation2], 4
      %s26 = int_to_ptr.vmem [resolvable:$true] %s25
      %31 = dma.hbm_to_vmem [thread:$0]  %s24, 3072, %s26, [#allocation3], 256, 256, 16
    $region9: #{cnn_forward.1} parent=1 // pred_fallthru
      _
    // Predicated region
    $region10: #{cnn_forward.1} parent=1 // pred_check
      _
    $region11: #{cnn_forward.1} parent=1 // pred_check_branch
      %33 = sbr.rel (0) target = $region13
    $region12: #{cnn_forward.1} parent=1 // pred_region
      _
    $region13: #{cnn_forward.1} parent=1 // pred_fallthru
      _
    // Predicated region
    $region14: #{cnn_forward.1} parent=1 // pred_check
      _
    $region15: #{cnn_forward.1} parent=1 // pred_check_branch
      %35 = sbr.rel (0) target = $region17
    $region16: #{cnn_forward.1} parent=1 // pred_region
      _
    $region17: #{cnn_forward.1} parent=1 // pred_fallthru
      _
    // Predicated region
    $region18: #{cnn_forward.1} parent=1 // pred_check
      _
    $region19: #{cnn_forward.1} parent=1 // pred_check_branch
      %37 = sbr.rel (0) target = $region21
    $region20: #{cnn_forward.1} parent=1 // pred_region
      %39 = vsyncadd [#allocation5], 0
      %s40 = sshll.u32 %s4, 4
      %s41 = int_to_ptr.hbm [resolvable:$true] %s40
      %s42 = sshll.u32 [#allocation4], 4
      %s43 = int_to_ptr.vmem [resolvable:$true] %s42
      %48 = dma.hbm_to_vmem [thread:$0]  %s41, 12288, %s43, [#allocation5], 256, 256, 16
    $region21: #{cnn_forward.1} parent=1 // pred_fallthru
      _
    // Predicated region
    $region22: #{cnn_forward.1} parent=1 // pred_check
      _
    $region23: #{cnn_forward.1} parent=1 // pred_check_branch
      %50 = sbr.rel (0) target = $region25
    $region24: #{cnn_forward.1} parent=1 // pred_region
      _
    $region25: #{cnn_forward.1} parent=1 // pred_fallthru
      _
    // Predicated region
    $region26: #{cnn_forward.1} parent=1 // pred_check
      _
    $region27: #{cnn_forward.1} parent=1 // pred_check_branch
      %52 = sbr.rel (0) target = $region29
    $region28: #{cnn_forward.1} parent=1 // pred_region
      %54 = vsyncadd [#allocation5], 0
      %s55 = sshll.u32 %s6, 4
      %s56 = int_to_ptr.hbm [resolvable:$true] %s55
      %s57 = sshll.u32 [#allocation6], 4
      %s58 = int_to_ptr.vmem [resolvable:$true] %s57
      %63 = dma.hbm_to_vmem [thread:$0]  %s56, 1792, %s58, [#allocation5], 128, 128, 8
    $region29: #{cnn_forward.1} parent=1 // pred_fallthru
      _
    // Predicated region
    $region30: #{cnn_forward.1} parent=1 // pred_check
      _
    $region31: #{cnn_forward.1} parent=1 // pred_check_branch
      %65 = sbr.rel (0) target = $region33
    $region32: #{cnn_forward.1} parent=1 // pred_region
      %67 = vsyncadd [#allocation8], 0
      %s68 = sshll.u32 %s7, 4
      %s69 = int_to_ptr.hbm [resolvable:$true] %s68
      %s70 = sshll.u32 [#allocation7], 4
      %s71 = int_to_ptr.vmem [resolvable:$true] %s70
      %76 = dma.hbm_to_vmem [thread:$0]  %s69, 14336, %s71, [#allocation8], 128, 128, 8
    $region33: #{cnn_forward.1} parent=1 // pred_fallthru
      _
    // Predicated region
    $region34: #{cnn_forward.1} parent=1 // pred_check
      _
    $region35: #{cnn_forward.1} parent=1 // pred_check_branch
      %78 = sbr.rel (0) target = $region37
    $region36: #{cnn_forward.1} parent=1 // pred_region
      _
    $region37: #{cnn_forward.1} parent=1 // pred_fallthru
      _
    // Predicated region
    $region38: #{cnn_forward.1} parent=1 // pred_check
      _
    $region39: #{cnn_forward.1} parent=1 // pred_check_branch
      %80 = sbr.rel (0) target = $region41
    $region40: #{cnn_forward.1} parent=1 // pred_region
      %82 = dma.done [#allocation3], 3072
    $region41: #{cnn_forward.1} parent=1 // pred_fallthru
      _
    // Predicated region
    $region42: #{cnn_forward.1} parent=1 // pred_check
      _
    $region43: #{cnn_forward.1} parent=1 // pred_check_branch
      %84 = sbr.rel (0) target = $region45
    $region44: #{cnn_forward.1} parent=1 // pred_region
      %86 = dma.done [#allocation5], 12288
    $region45: #{cnn_forward.1} parent=1 // pred_fallthru
      _
    // Predicated region
    $region46: #{cnn_forward.1} parent=1 // pred_check
      _
    $region47: #{cnn_forward.1} parent=1 // pred_check_branch
      %88 = sbr.rel (0) target = $region49
    $region48: #{cnn_forward.1} parent=1 // pred_region
      %90 = dma.done [#allocation5], 1792
    $region49: #{cnn_forward.1} parent=1 // pred_fallthru
      _
    // Predicated region
    $region50: #{cnn_forward.1} parent=1 // pred_check
      _
    $region51: #{cnn_forward.1} parent=1 // pred_check_branch
      %92 = sbr.rel (0) target = $region53
    $region52: #{cnn_forward.1} parent=1 // pred_region
      %94 = dma.done [#allocation8], 14336
    $region53: #{cnn_forward.1} parent=1 // pred_fallthru
      _
    %v95 = vld [vmem:[%s0] sm:$0xff]
    %v96 = vld [vmem:[%s0 + $0x8] sm:$0xff]
    %v97 = vld [vmem:[%s0 + $0x10] sm:$0xff]
    %v98 = vld [vmem:[%s0 + $0x18] sm:$0xff]
    %v99 = vld [vmem:[%s0 + $0x20] sm:$0xff]
    %v100 = vld [vmem:[%s0 + $0x28] sm:$0xff]
    %v101 = vld [vmem:[%s0 + $0x30] sm:$0xff]
    %v102 = vld [vmem:[%s0 + $0x38] sm:$0xff]
    %v103 = vld [vmem:[%s0 + $0x40] sm:$0xff]
    %v104 = vld [vmem:[%s0 + $0x48] sm:$0xff]
    %v105 = vld [vmem:[%s0 + $0x50] sm:$0xff]
    %v106 = vld [vmem:[%s0 + $0x58] sm:$0xff]
    %v107 = vld [vmem:[%s0 + $0x60] sm:$0xff]
    %v108 = vld [vmem:[%s0 + $0x68] sm:$0xff]
    %v109 = vld [vmem:[%s0 + $0x70] sm:$0xff]
    %v110 = vld [vmem:[%s0 + $0x78] sm:$0xff]
    %v111 = vld [vmem:[%s0 + $0x80] sm:$0xff]
    %v112 = vld [vmem:[%s0 + $0x88] sm:$0xff]
    %v113 = vld [vmem:[%s0 + $0x90] sm:$0xff]
    %v114 = vld [vmem:[%s0 + $0x98] sm:$0xff]
    %v115 = vld [vmem:[%s0 + $0xa0] sm:$0xff]
    %v116 = vld [vmem:[%s0 + $0xa8] sm:$0xff]
    %v117 = vld [vmem:[%s0 + $0xb0] sm:$0xff]
    %v118 = vld [vmem:[%s0 + $0xb8] sm:$0xff]
    %v119 = vld [vmem:[%s0 + $0xc0] sm:$0xff]
    %v120 = vld [vmem:[%s0 + $0xc8] sm:$0xff]
    %v121 = vld [vmem:[%s0 + $0xd0] sm:$0xff]
    %v122 = vld [vmem:[%s0 + $0xd8] sm:$0xff]
    %v123 = vld [vmem:[%s0 + $0xe0] sm:$0xff]
    %v124 = vld [vmem:[%s0 + $0xe8] sm:$0xff]
    %v125 = vld [vmem:[%s0 + $0xf0] sm:$0xff]
    %v126 = vld [vmem:[%s0 + $0xf8] sm:$0x3f]
    %v127 = vld [vmem:[#allocation2] sm:$0xff]
    %v128 = vld [vmem:[#allocation2 + $0x8] sm:$0xff]
    %v129 = vld [vmem:[#allocation2 + $0x10] sm:$0xff]
    %v130 = vld [vmem:[#allocation2 + $0x18] sm:$0xff]
    %v131 = vld [vmem:[#allocation2 + $0x20] sm:$0xff]
    %v132 = vld [vmem:[#allocation2 + $0x28] sm:$0xff]
    %v133 = vld [vmem:[#allocation2 + $0x30] sm:$0x3f]
    %v134 = vld [vmem:[#allocation2 + $0x38] sm:$0x3f]
    %v135 = vld [vmem:[%s0 + $0x1] sm:$0xff]
    %v136 = vld [vmem:[%s0 + $0x9] sm:$0xff]
    %v137 = vld [vmem:[%s0 + $0x11] sm:$0xff]
    %v138 = vld [vmem:[%s0 + $0x19] sm:$0xff]
    %v139 = vld [vmem:[%s0 + $0x21] sm:$0xff]
    %v140 = vld [vmem:[%s0 + $0x29] sm:$0xff]
    %v141 = vld [vmem:[%s0 + $0x31] sm:$0xff]
    %v142 = vld [vmem:[%s0 + $0x39] sm:$0xff]
    %v143 = vld [vmem:[%s0 + $0x41] sm:$0xff]
    %v144 = vld [vmem:[%s0 + $0x49] sm:$0xff]
    %v145 = vld [vmem:[%s0 + $0x51] sm:$0xff]
    %v146 = vld [vmem:[%s0 + $0x59] sm:$0xff]
    %v147 = vld [vmem:[%s0 + $0x61] sm:$0xff]
    %v148 = vld [vmem:[%s0 + $0x69] sm:$0xff]
    %v149 = vld [vmem:[%s0 + $0x71] sm:$0xff]
    %v150 = vld [vmem:[%s0 + $0x79] sm:$0xff]
    %v151 = vld [vmem:[%s0 + $0x81] sm:$0xff]
    %v152 = vld [vmem:[%s0 + $0x89] sm:$0xff]
    %v153 = vld [vmem:[%s0 + $0x91] sm:$0xff]
    %v154 = vld [vmem:[%s0 + $0x99] sm:$0xff]
    %v155 = vld [vmem:[%s0 + $0xa1] sm:$0xff]
    %v156 = vld [vmem:[%s0 + $0xa9] sm:$0xff]
    %v157 = vld [vmem:[%s0 + $0xb1] sm:$0xff]
    %v158 = vld [vmem:[%s0 + $0xb9] sm:$0xff]
    %v159 = vld [vmem:[%s0 + $0xc1] sm:$0xff]
    %v160 = vld [vmem:[%s0 + $0xc9] sm:$0xff]
    %v161 = vld [vmem:[%s0 + $0xd1] sm:$0xff]
    %v162 = vld [vmem:[%s0 + $0xd9] sm:$0xff]
    %v163 = vld [vmem:[%s0 + $0xe1] sm:$0xff]
    %v164 = vld [vmem:[%s0 + $0xe9] sm:$0xff]
    %v165 = vld [vmem:[%s0 + $0xf1] sm:$0xff]
    %v166 = vld [vmem:[%s0 + $0xf9] sm:$0x3f]
    %s167 = scalar_lea.vmem [#allocation2], 64
    %v168 = vld [vmem:[%s167] sm:$0xff]
    %v169 = vld [vmem:[%s167 + $0x8] sm:$0xff]
    %v170 = vld [vmem:[%s167 + $0x10] sm:$0xff]
    %v171 = vld [vmem:[%s167 + $0x18] sm:$0xff]
    %v172 = vld [vmem:[%s167 + $0x20] sm:$0xff]
    %v173 = vld [vmem:[%s167 + $0x28] sm:$0xff]
    %v174 = vld [vmem:[%s167 + $0x30] sm:$0x3f]
    %v175 = vld [vmem:[%s167 + $0x38] sm:$0x3f]
    %vm176 = vcmask 244736
    %v178 = vsel %vm176, %v135, 0
    %v181 = vsel %vm176, %v136, 0
    %v184 = vsel %vm176, %v137, 0
    %v187 = vsel %vm176, %v138, 0
    %v190 = vsel %vm176, %v139, 0
    %v193 = vsel %vm176, %v140, 0
    %v196 = vsel %vm176, %v141, 0
    %v199 = vsel %vm176, %v142, 0
    %v202 = vsel %vm176, %v143, 0
    %v205 = vsel %vm176, %v144, 0
    %v208 = vsel %vm176, %v145, 0
    %v211 = vsel %vm176, %v146, 0
    %v214 = vsel %vm176, %v147, 0
    %v217 = vsel %vm176, %v148, 0
    %v220 = vsel %vm176, %v149, 0
    %v223 = vsel %vm176, %v150, 0
    %v226 = vsel %vm176, %v151, 0
    %v229 = vsel %vm176, %v152, 0
    %v232 = vsel %vm176, %v153, 0
    %v235 = vsel %vm176, %v154, 0
    %v238 = vsel %vm176, %v155, 0
    %v241 = vsel %vm176, %v156, 0
    %v244 = vsel %vm176, %v157, 0
    %v247 = vsel %vm176, %v158, 0
    %v250 = vsel %vm176, %v159, 0
    %v253 = vsel %vm176, %v160, 0
    %v256 = vsel %vm176, %v161, 0
    %v259 = vsel %vm176, %v162, 0
    %v262 = vsel %vm176, %v163, 0
    %v265 = vsel %vm176, %v164, 0
    %v268 = vsel %vm176, %v165, 0
    %v271 = vsel %vm176, %v166, 0
    %vm273 = vcmask 1045504
    %v275 = vsel %vm273, %v174, 0
    %v278 = vsel %vm273, %v175, 0
    %280 = vmatpush.msra.mxu0 0.0
    %281 = vmatpush.msra.mxu0 0.0
    %282 = vmatpush.msra.mxu0 0.0
    %283 = vmatpush.msra.mxu0 0.0
    %284 = vmatpush.msra.mxu0 0.0
    %285 = vmatpush.msra.mxu0 0.0
    %286 = vmatpush.msra.mxu0 0.0
    %287 = vmatpush.msra.mxu0 0.0
    %288 = vmatpush.msra.mxu0 0.0
    %289 = vmatpush.msra.mxu0 0.0
    %290 = vmatpush.msra.mxu0 0.0
    %291 = vmatpush.msra.mxu0 0.0
    %292 = vmatpush.msra.mxu0 %v275
    %293 = vmatpush.msra.mxu0 %v172
    %294 = vmatpush.msra.mxu0 %v170
    %295 = vmatpush.msra.mxu0 %v168
    %296 = vmatmul.f32.gmra.mxu0 %v178
    %v297 = vpop.f32.mrf.mxu0
    %v298 = vadd.f32 0.0, %v297
    %299 = vmatmul.f32.gmra.mxu0 %v181
    %v300 = vpop.f32.mrf.mxu0
    %v301 = vadd.f32 0.0, %v300
    %302 = vmatmul.f32.gmra.mxu0 %v184
    %v303 = vpop.f32.mrf.mxu0
    %v304 = vadd.f32 0.0, %v303
    %305 = vmatmul.f32.gmra.mxu0 %v187
    %v306 = vpop.f32.mrf.mxu0
    %v307 = vadd.f32 0.0, %v306
    %308 = vmatmul.f32.gmra.mxu0 %v190
    %v309 = vpop.f32.mrf.mxu0
    %v310 = vadd.f32 0.0, %v309
    %311 = vmatmul.f32.gmra.mxu0 %v193
    %v312 = vpop.f32.mrf.mxu0
    %v313 = vadd.f32 0.0, %v312
    %314 = vmatmul.f32.gmra.mxu0 %v196
    %v315 = vpop.f32.mrf.mxu0
    %v316 = vadd.f32 0.0, %v315
    %317 = vmatmul.f32.gmra.mxu0 %v199
    %v318 = vpop.f32.mrf.mxu0
    %v319 = vadd.f32 0.0, %v318
    %320 = vmatmul.f32.gmra.mxu0 %v202
    %v321 = vpop.f32.mrf.mxu0
    %v322 = vadd.f32 0.0, %v321
    %323 = vmatmul.f32.gmra.mxu0 %v205
    %v324 = vpop.f32.mrf.mxu0
    %v325 = vadd.f32 0.0, %v324
    %326 = vmatmul.f32.gmra.mxu0 %v208
    %v327 = vpop.f32.mrf.mxu0
    %v328 = vadd.f32 0.0, %v327
    %329 = vmatmul.f32.gmra.mxu0 %v211
    %v330 = vpop.f32.mrf.mxu0
    %v331 = vadd.f32 0.0, %v330
    %332 = vmatmul.f32.gmra.mxu0 %v214
    %v333 = vpop.f32.mrf.mxu0
    %v334 = vadd.f32 0.0, %v333
    %335 = vmatmul.f32.gmra.mxu0 %v217
    %v336 = vpop.f32.mrf.mxu0
    %v337 = vadd.f32 0.0, %v336
    %338 = vmatmul.f32.gmra.mxu0 %v220
    %v339 = vpop.f32.mrf.mxu0
    %v340 = vadd.f32 0.0, %v339
    %341 = vmatmul.f32.gmra.mxu0 %v223
    %v342 = vpop.f32.mrf.mxu0
    %v343 = vadd.f32 0.0, %v342
    %344 = vmatmul.f32.gmra.mxu0 %v226
    %v345 = vpop.f32.mrf.mxu0
    %v346 = vadd.f32 0.0, %v345
    %347 = vmatmul.f32.gmra.mxu0 %v229
    %v348 = vpop.f32.mrf.mxu0
    %v349 = vadd.f32 0.0, %v348
    %350 = vmatmul.f32.gmra.mxu0 %v232
    %v351 = vpop.f32.mrf.mxu0
    %v352 = vadd.f32 0.0, %v351
    %353 = vmatmul.f32.gmra.mxu0 %v235
    %v354 = vpop.f32.mrf.mxu0
    %v355 = vadd.f32 0.0, %v354
    %356 = vmatmul.f32.gmra.mxu0 %v238
    %v357 = vpop.f32.mrf.mxu0
    %v358 = vadd.f32 0.0, %v357
    %359 = vmatmul.f32.gmra.mxu0 %v241
    %v360 = vpop.f32.mrf.mxu0
    %v361 = vadd.f32 0.0, %v360
    %362 = vmatmul.f32.gmra.mxu0 %v244
    %v363 = vpop.f32.mrf.mxu0
    %v364 = vadd.f32 0.0, %v363
    %365 = vmatmul.f32.gmra.mxu0 %v247
    %v366 = vpop.f32.mrf.mxu0
    %v367 = vadd.f32 0.0, %v366
    %368 = vmatmul.f32.gmra.mxu0 %v250
    %v369 = vpop.f32.mrf.mxu0
    %v370 = vadd.f32 0.0, %v369
    %371 = vmatmul.f32.gmra.mxu0 %v253
    %v372 = vpop.f32.mrf.mxu0
    %v373 = vadd.f32 0.0, %v372
    %374 = vmatmul.f32.gmra.mxu0 %v256
    %v375 = vpop.f32.mrf.mxu0
    %v376 = vadd.f32 0.0, %v375
    %377 = vmatmul.f32.gmra.mxu0 %v259
    %v378 = vpop.f32.mrf.mxu0
    %v379 = vadd.f32 0.0, %v378
    %380 = vmatmul.f32.gmra.mxu0 %v262
    %v381 = vpop.f32.mrf.mxu0
    %v382 = vadd.f32 0.0, %v381
    %383 = vmatmul.f32.gmra.mxu0 %v265
    %v384 = vpop.f32.mrf.mxu0
    %v385 = vadd.f32 0.0, %v384
    %386 = vmatmul.f32.gmra.mxu0 %v268
    %v387 = vpop.f32.mrf.mxu0
    %v388 = vadd.f32 0.0, %v387
    %389 = vmatmul.f32.gmra.mxu0 %v271
    %v390 = vpop.f32.mrf.mxu0
    %v391 = vadd.f32 0.0, %v390
    %392 = vdwg.mxu0
    %393 = vmatpush.msra.mxu0 0.0
    %394 = vmatpush.msra.mxu0 0.0
    %395 = vmatpush.msra.mxu0 0.0
    %396 = vmatpush.msra.mxu0 0.0
    %397 = vmatpush.msra.mxu0 0.0
    %398 = vmatpush.msra.mxu0 0.0
    %399 = vmatpush.msra.mxu0 0.0
    %400 = vmatpush.msra.mxu0 0.0
    %401 = vmatpush.msra.mxu0 0.0
    %402 = vmatpush.msra.mxu0 0.0
    %403 = vmatpush.msra.mxu0 0.0
    %404 = vmatpush.msra.mxu0 0.0
    %405 = vmatpush.msra.mxu0 %v278
    %406 = vmatpush.msra.mxu0 %v173
    %407 = vmatpush.msra.mxu0 %v171
    %408 = vmatpush.msra.mxu0 %v169
    %409 = vmatmul.f32.gmra.mxu0 %v178
    %v410 = vpop.f32.mrf.mxu0
    %v411 = vadd.f32 0.0, %v410
    %412 = vmatmul.f32.gmra.mxu0 %v181
    %v413 = vpop.f32.mrf.mxu0
    %v414 = vadd.f32 0.0, %v413
    %415 = vmatmul.f32.gmra.mxu0 %v184
    %v416 = vpop.f32.mrf.mxu0
    %v417 = vadd.f32 0.0, %v416
    %418 = vmatmul.f32.gmra.mxu0 %v187
    %v419 = vpop.f32.mrf.mxu0
    %v420 = vadd.f32 0.0, %v419
    %421 = vmatmul.f32.gmra.mxu0 %v190
    %v422 = vpop.f32.mrf.mxu0
    %v423 = vadd.f32 0.0, %v422
    %424 = vmatmul.f32.gmra.mxu0 %v193
    %v425 = vpop.f32.mrf.mxu0
    %v426 = vadd.f32 0.0, %v425
    %427 = vmatmul.f32.gmra.mxu0 %v196
    %v428 = vpop.f32.mrf.mxu0
    %v429 = vadd.f32 0.0, %v428
    %430 = vmatmul.f32.gmra.mxu0 %v199
    %v431 = vpop.f32.mrf.mxu0
    %v432 = vadd.f32 0.0, %v431
    %433 = vmatmul.f32.gmra.mxu0 %v202
    %v434 = vpop.f32.mrf.mxu0
    %v435 = vadd.f32 0.0, %v434
    %436 = vmatmul.f32.gmra.mxu0 %v205
    %v437 = vpop.f32.mrf.mxu0
    %v438 = vadd.f32 0.0, %v437
    %439 = vmatmul.f32.gmra.mxu0 %v208
    %v440 = vpop.f32.mrf.mxu0
    %v441 = vadd.f32 0.0, %v440
    %442 = vmatmul.f32.gmra.mxu0 %v211
    %v443 = vpop.f32.mrf.mxu0
    %v444 = vadd.f32 0.0, %v443
    %445 = vmatmul.f32.gmra.mxu0 %v214
    %v446 = vpop.f32.mrf.mxu0
    %v447 = vadd.f32 0.0, %v446
    %448 = vmatmul.f32.gmra.mxu0 %v217
    %v449 = vpop.f32.mrf.mxu0
    %v450 = vadd.f32 0.0, %v449
    %451 = vmatmul.f32.gmra.mxu0 %v220
    %v452 = vpop.f32.mrf.mxu0
    %v453 = vadd.f32 0.0, %v452
    %454 = vmatmul.f32.gmra.mxu0 %v223
    %v455 = vpop.f32.mrf.mxu0
    %v456 = vadd.f32 0.0, %v455
    %457 = vmatmul.f32.gmra.mxu0 %v226
    %v458 = vpop.f32.mrf.mxu0
    %v459 = vadd.f32 0.0, %v458
    %460 = vmatmul.f32.gmra.mxu0 %v229
    %v461 = vpop.f32.mrf.mxu0
    %v462 = vadd.f32 0.0, %v461
    %463 = vmatmul.f32.gmra.mxu0 %v232
    %v464 = vpop.f32.mrf.mxu0
    %v465 = vadd.f32 0.0, %v464
    %466 = vmatmul.f32.gmra.mxu0 %v235
    %v467 = vpop.f32.mrf.mxu0
    %v468 = vadd.f32 0.0, %v467
    %469 = vmatmul.f32.gmra.mxu0 %v238
    %v470 = vpop.f32.mrf.mxu0
    %v471 = vadd.f32 0.0, %v470
    %472 = vmatmul.f32.gmra.mxu0 %v241
    %v473 = vpop.f32.mrf.mxu0
    %v474 = vadd.f32 0.0, %v473
    %475 = vmatmul.f32.gmra.mxu0 %v244
    %v476 = vpop.f32.mrf.mxu0
    %v477 = vadd.f32 0.0, %v476
    %478 = vmatmul.f32.gmra.mxu0 %v247
    %v479 = vpop.f32.mrf.mxu0
    %v480 = vadd.f32 0.0, %v479
    %481 = vmatmul.f32.gmra.mxu0 %v250
    %v482 = vpop.f32.mrf.mxu0
    %v483 = vadd.f32 0.0, %v482
    %484 = vmatmul.f32.gmra.mxu0 %v253
    %v485 = vpop.f32.mrf.mxu0
    %v486 = vadd.f32 0.0, %v485
    %487 = vmatmul.f32.gmra.mxu0 %v256
    %v488 = vpop.f32.mrf.mxu0
    %v489 = vadd.f32 0.0, %v488
    %490 = vmatmul.f32.gmra.mxu0 %v259
    %v491 = vpop.f32.mrf.mxu0
    %v492 = vadd.f32 0.0, %v491
    %493 = vmatmul.f32.gmra.mxu0 %v262
    %v494 = vpop.f32.mrf.mxu0
    %v495 = vadd.f32 0.0, %v494
    %496 = vmatmul.f32.gmra.mxu0 %v265
    %v497 = vpop.f32.mrf.mxu0
    %v498 = vadd.f32 0.0, %v497
    %499 = vmatmul.f32.gmra.mxu0 %v268
    %v500 = vpop.f32.mrf.mxu0
    %v501 = vadd.f32 0.0, %v500
    %502 = vmatmul.f32.gmra.mxu0 %v271
    %v503 = vpop.f32.mrf.mxu0
    %v504 = vadd.f32 0.0, %v503
    %505 = vdwg.mxu0
    %v507 = vsel %vm176, %v95, 0
    %v510 = vsel %vm176, %v96, 0
    %v513 = vsel %vm176, %v97, 0
    %v516 = vsel %vm176, %v98, 0
    %v519 = vsel %vm176, %v99, 0
    %v522 = vsel %vm176, %v100, 0
    %v525 = vsel %vm176, %v101, 0
    %v528 = vsel %vm176, %v102, 0
    %v531 = vsel %vm176, %v103, 0
    %v534 = vsel %vm176, %v104, 0
    %v537 = vsel %vm176, %v105, 0
    %v540 = vsel %vm176, %v106, 0
    %v543 = vsel %vm176, %v107, 0
    %v546 = vsel %vm176, %v108, 0
    %v549 = vsel %vm176, %v109, 0
    %v552 = vsel %vm176, %v110, 0
    %v555 = vsel %vm176, %v111, 0
    %v558 = vsel %vm176, %v112, 0
    %v561 = vsel %vm176, %v113, 0
    %v564 = vsel %vm176, %v114, 0
    %v567 = vsel %vm176, %v115, 0
    %v570 = vsel %vm176, %v116, 0
    %v573 = vsel %vm176, %v117, 0
    %v576 = vsel %vm176, %v118, 0
    %v579 = vsel %vm176, %v119, 0
    %v582 = vsel %vm176, %v120, 0
    %v585 = vsel %vm176, %v121, 0
    %v588 = vsel %vm176, %v122, 0
    %v591 = vsel %vm176, %v123, 0
    %v594 = vsel %vm176, %v124, 0
    %v597 = vsel %vm176, %v125, 0
    %v600 = vsel %vm176, %v126, 0
    %v603 = vsel %vm273, %v133, 0
    %v606 = vsel %vm273, %v134, 0
    %608 = vmatpush.msra.mxu0 0.0
    %609 = vmatpush.msra.mxu0 0.0
    %610 = vmatpush.msra.mxu0 0.0
    %611 = vmatpush.msra.mxu0 0.0
    %612 = vmatpush.msra.mxu0 0.0
    %613 = vmatpush.msra.mxu0 0.0
    %614 = vmatpush.msra.mxu0 0.0
    %615 = vmatpush.msra.mxu0 0.0
    %616 = vmatpush.msra.mxu0 0.0
    %617 = vmatpush.msra.mxu0 0.0
    %618 = vmatpush.msra.mxu0 0.0
    %619 = vmatpush.msra.mxu0 0.0
    %620 = vmatpush.msra.mxu0 %v603
    %621 = vmatpush.msra.mxu0 %v131
    %622 = vmatpush.msra.mxu0 %v129
    %623 = vmatpush.msra.mxu0 %v127
    %624 = vmatmul.f32.gmra.mxu0 %v507
    %v625 = vpop.f32.mrf.mxu0
    %v626 = vadd.f32 %v298, %v625
    %627 = vmatmul.f32.gmra.mxu0 %v510
    %v628 = vpop.f32.mrf.mxu0
    %v629 = vadd.f32 %v301, %v628
    %630 = vmatmul.f32.gmra.mxu0 %v513
    %v631 = vpop.f32.mrf.mxu0
    %v632 = vadd.f32 %v304, %v631
    %633 = vmatmul.f32.gmra.mxu0 %v516
    %v634 = vpop.f32.mrf.mxu0
    %v635 = vadd.f32 %v307, %v634
    %636 = vmatmul.f32.gmra.mxu0 %v519
    %v637 = vpop.f32.mrf.mxu0
    %v638 = vadd.f32 %v310, %v637
    %639 = vmatmul.f32.gmra.mxu0 %v522
    %v640 = vpop.f32.mrf.mxu0
    %v641 = vadd.f32 %v313, %v640
    %642 = vmatmul.f32.gmra.mxu0 %v525
    %v643 = vpop.f32.mrf.mxu0
    %v644 = vadd.f32 %v316, %v643
    %645 = vmatmul.f32.gmra.mxu0 %v528
    %v646 = vpop.f32.mrf.mxu0
    %v647 = vadd.f32 %v319, %v646
    %648 = vmatmul.f32.gmra.mxu0 %v531
    %v649 = vpop.f32.mrf.mxu0
    %v650 = vadd.f32 %v322, %v649
    %651 = vmatmul.f32.gmra.mxu0 %v534
    %v652 = vpop.f32.mrf.mxu0
    %v653 = vadd.f32 %v325, %v652
    %654 = vmatmul.f32.gmra.mxu0 %v537
    %v655 = vpop.f32.mrf.mxu0
    %v656 = vadd.f32 %v328, %v655
    %657 = vmatmul.f32.gmra.mxu0 %v540
    %v658 = vpop.f32.mrf.mxu0
    %v659 = vadd.f32 %v331, %v658
    %660 = vmatmul.f32.gmra.mxu0 %v543
    %v661 = vpop.f32.mrf.mxu0
    %v662 = vadd.f32 %v334, %v661
    %663 = vmatmul.f32.gmra.mxu0 %v546
    %v664 = vpop.f32.mrf.mxu0
    %v665 = vadd.f32 %v337, %v664
    %666 = vmatmul.f32.gmra.mxu0 %v549
    %v667 = vpop.f32.mrf.mxu0
    %v668 = vadd.f32 %v340, %v667
    %669 = vmatmul.f32.gmra.mxu0 %v552
    %v670 = vpop.f32.mrf.mxu0
    %v671 = vadd.f32 %v343, %v670
    %672 = vmatmul.f32.gmra.mxu0 %v555
    %v673 = vpop.f32.mrf.mxu0
    %v674 = vadd.f32 %v346, %v673
    %675 = vmatmul.f32.gmra.mxu0 %v558
    %v676 = vpop.f32.mrf.mxu0
    %v677 = vadd.f32 %v349, %v676
    %678 = vmatmul.f32.gmra.mxu0 %v561
    %v679 = vpop.f32.mrf.mxu0
    %v680 = vadd.f32 %v352, %v679
    %681 = vmatmul.f32.gmra.mxu0 %v564
    %v682 = vpop.f32.mrf.mxu0
    %v683 = vadd.f32 %v355, %v682
    %684 = vmatmul.f32.gmra.mxu0 %v567
    %v685 = vpop.f32.mrf.mxu0
    %v686 = vadd.f32 %v358, %v685
    %687 = vmatmul.f32.gmra.mxu0 %v570
    %v688 = vpop.f32.mrf.mxu0
    %v689 = vadd.f32 %v361, %v688
    %690 = vmatmul.f32.gmra.mxu0 %v573
    %v691 = vpop.f32.mrf.mxu0
    %v692 = vadd.f32 %v364, %v691
    %693 = vmatmul.f32.gmra.mxu0 %v576
    %v694 = vpop.f32.mrf.mxu0
    %v695 = vadd.f32 %v367, %v694
    %696 = vmatmul.f32.gmra.mxu0 %v579
    %v697 = vpop.f32.mrf.mxu0
    %v698 = vadd.f32 %v370, %v697
    %699 = vmatmul.f32.gmra.mxu0 %v582
    %v700 = vpop.f32.mrf.mxu0
    %v701 = vadd.f32 %v373, %v700
    %702 = vmatmul.f32.gmra.mxu0 %v585
    %v703 = vpop.f32.mrf.mxu0
    %v704 = vadd.f32 %v376, %v703
    %705 = vmatmul.f32.gmra.mxu0 %v588
    %v706 = vpop.f32.mrf.mxu0
    %v707 = vadd.f32 %v379, %v706
    %708 = vmatmul.f32.gmra.mxu0 %v591
    %v709 = vpop.f32.mrf.mxu0
    %v710 = vadd.f32 %v382, %v709
    %711 = vmatmul.f32.gmra.mxu0 %v594
    %v712 = vpop.f32.mrf.mxu0
    %v713 = vadd.f32 %v385, %v712
    %714 = vmatmul.f32.gmra.mxu0 %v597
    %v715 = vpop.f32.mrf.mxu0
    %v716 = vadd.f32 %v388, %v715
    %717 = vmatmul.f32.gmra.mxu0 %v600
    %v718 = vpop.f32.mrf.mxu0
    %v719 = vadd.f32 %v391, %v718
    %720 = vdwg.mxu0
    %721 = vmatpush.msra.mxu0 0.0
    %722 = vmatpush.msra.mxu0 0.0
    %723 = vmatpush.msra.mxu0 0.0
    %724 = vmatpush.msra.mxu0 0.0
    %725 = vmatpush.msra.mxu0 0.0
    %726 = vmatpush.msra.mxu0 0.0
    %727 = vmatpush.msra.mxu0 0.0
    %728 = vmatpush.msra.mxu0 0.0
    %729 = vmatpush.msra.mxu0 0.0
    %730 = vmatpush.msra.mxu0 0.0
    %731 = vmatpush.msra.mxu0 0.0
    %732 = vmatpush.msra.mxu0 0.0
    %733 = vmatpush.msra.mxu0 %v606
    %734 = vmatpush.msra.mxu0 %v132
    %735 = vmatpush.msra.mxu0 %v130
    %736 = vmatpush.msra.mxu0 %v128
    %737 = vmatmul.f32.gmra.mxu0 %v507
    %v738 = vpop.f32.mrf.mxu0
    %v739 = vadd.f32 %v411, %v738
    %740 = vmatmul.f32.gmra.mxu0 %v510
    %v741 = vpop.f32.mrf.mxu0
    %v742 = vadd.f32 %v414, %v741
    %743 = vmatmul.f32.gmra.mxu0 %v513
    %v744 = vpop.f32.mrf.mxu0
    %v745 = vadd.f32 %v417, %v744
    %746 = vmatmul.f32.gmra.mxu0 %v516
    %v747 = vpop.f32.mrf.mxu0
    %v748 = vadd.f32 %v420, %v747
    %749 = vmatmul.f32.gmra.mxu0 %v519
    %v750 = vpop.f32.mrf.mxu0
    %v751 = vadd.f32 %v423, %v750
    %752 = vmatmul.f32.gmra.mxu0 %v522
    %v753 = vpop.f32.mrf.mxu0
    %v754 = vadd.f32 %v426, %v753
    %755 = vmatmul.f32.gmra.mxu0 %v525
    %v756 = vpop.f32.mrf.mxu0
    %v757 = vadd.f32 %v429, %v756
    %758 = vmatmul.f32.gmra.mxu0 %v528
    %v759 = vpop.f32.mrf.mxu0
    %v760 = vadd.f32 %v432, %v759
    %761 = vmatmul.f32.gmra.mxu0 %v531
    %v762 = vpop.f32.mrf.mxu0
    %v763 = vadd.f32 %v435, %v762
    %764 = vmatmul.f32.gmra.mxu0 %v534
    %v765 = vpop.f32.mrf.mxu0
    %v766 = vadd.f32 %v438, %v765
    %767 = vmatmul.f32.gmra.mxu0 %v537
    %v768 = vpop.f32.mrf.mxu0
    %v769 = vadd.f32 %v441, %v768
    %770 = vmatmul.f32.gmra.mxu0 %v540
    %v771 = vpop.f32.mrf.mxu0
    %v772 = vadd.f32 %v444, %v771
    %773 = vmatmul.f32.gmra.mxu0 %v543
    %v774 = vpop.f32.mrf.mxu0
    %v775 = vadd.f32 %v447, %v774
    %776 = vmatmul.f32.gmra.mxu0 %v546
    %v777 = vpop.f32.mrf.mxu0
    %v778 = vadd.f32 %v450, %v777
    %779 = vmatmul.f32.gmra.mxu0 %v549
    %v780 = vpop.f32.mrf.mxu0
    %v781 = vadd.f32 %v453, %v780
    %782 = vmatmul.f32.gmra.mxu0 %v552
    %v783 = vpop.f32.mrf.mxu0
    %v784 = vadd.f32 %v456, %v783
    %785 = vmatmul.f32.gmra.mxu0 %v555
    %v786 = vpop.f32.mrf.mxu0
    %v787 = vadd.f32 %v459, %v786
    %788 = vmatmul.f32.gmra.mxu0 %v558
    %v789 = vpop.f32.mrf.mxu0
    %v790 = vadd.f32 %v462, %v789
    %791 = vmatmul.f32.gmra.mxu0 %v561
    %v792 = vpop.f32.mrf.mxu0
    %v793 = vadd.f32 %v465, %v792
    %794 = vmatmul.f32.gmra.mxu0 %v564
    %v795 = vpop.f32.mrf.mxu0
    %v796 = vadd.f32 %v468, %v795
    %797 = vmatmul.f32.gmra.mxu0 %v567
    %v798 = vpop.f32.mrf.mxu0
    %v799 = vadd.f32 %v471, %v798
    %800 = vmatmul.f32.gmra.mxu0 %v570
    %v801 = vpop.f32.mrf.mxu0
    %v802 = vadd.f32 %v474, %v801
    %803 = vmatmul.f32.gmra.mxu0 %v573
    %v804 = vpop.f32.mrf.mxu0
    %v805 = vadd.f32 %v477, %v804
    %806 = vmatmul.f32.gmra.mxu0 %v576
    %v807 = vpop.f32.mrf.mxu0
    %v808 = vadd.f32 %v480, %v807
    %809 = vmatmul.f32.gmra.mxu0 %v579
    %v810 = vpop.f32.mrf.mxu0
    %v811 = vadd.f32 %v483, %v810
    %812 = vmatmul.f32.gmra.mxu0 %v582
    %v813 = vpop.f32.mrf.mxu0
    %v814 = vadd.f32 %v486, %v813
    %815 = vmatmul.f32.gmra.mxu0 %v585
    %v816 = vpop.f32.mrf.mxu0
    %v817 = vadd.f32 %v489, %v816
    %818 = vmatmul.f32.gmra.mxu0 %v588
    %v819 = vpop.f32.mrf.mxu0
    %v820 = vadd.f32 %v492, %v819
    %821 = vmatmul.f32.gmra.mxu0 %v591
    %v822 = vpop.f32.mrf.mxu0
    %v823 = vadd.f32 %v495, %v822
    %824 = vmatmul.f32.gmra.mxu0 %v594
    %v825 = vpop.f32.mrf.mxu0
    %v826 = vadd.f32 %v498, %v825
    %827 = vmatmul.f32.gmra.mxu0 %v597
    %v828 = vpop.f32.mrf.mxu0
    %v829 = vadd.f32 %v501, %v828
    %830 = vmatmul.f32.gmra.mxu0 %v600
    %v831 = vpop.f32.mrf.mxu0
    %v832 = vadd.f32 %v504, %v831
    %833 = vdwg.mxu0
    %v834 = vld [vmem:[%s0 + $0x2] sm:$0xff]
    %v835 = vld [vmem:[%s0 + $0xa] sm:$0xff]
    %v836 = vld [vmem:[%s0 + $0x12] sm:$0xff]
    %v837 = vld [vmem:[%s0 + $0x1a] sm:$0xff]
    %v838 = vld [vmem:[%s0 + $0x22] sm:$0xff]
    %v839 = vld [vmem:[%s0 + $0x2a] sm:$0xff]
    %v840 = vld [vmem:[%s0 + $0x32] sm:$0xff]
    %v841 = vld [vmem:[%s0 + $0x3a] sm:$0xff]
    %v842 = vld [vmem:[%s0 + $0x42] sm:$0xff]
    %v843 = vld [vmem:[%s0 + $0x4a] sm:$0xff]
    %v844 = vld [vmem:[%s0 + $0x52] sm:$0xff]
    %v845 = vld [vmem:[%s0 + $0x5a] sm:$0xff]
    %v846 = vld [vmem:[%s0 + $0x62] sm:$0xff]
    %v847 = vld [vmem:[%s0 + $0x6a] sm:$0xff]
    %v848 = vld [vmem:[%s0 + $0x72] sm:$0xff]
    %v849 = vld [vmem:[%s0 + $0x7a] sm:$0xff]
    %v850 = vld [vmem:[%s0 + $0x82] sm:$0xff]
    %v851 = vld [vmem:[%s0 + $0x8a] sm:$0xff]
    %v852 = vld [vmem:[%s0 + $0x92] sm:$0xff]
    %v853 = vld [vmem:[%s0 + $0x9a] sm:$0xff]
    %v854 = vld [vmem:[%s0 + $0xa2] sm:$0xff]
    %v855 = vld [vmem:[%s0 + $0xaa] sm:$0xff]
    %v856 = vld [vmem:[%s0 + $0xb2] sm:$0xff]
    %v857 = vld [vmem:[%s0 + $0xba] sm:$0xff]
    %v858 = vld [vmem:[%s0 + $0xc2] sm:$0xff]
    %v859 = vld [vmem:[%s0 + $0xca] sm:$0xff]
    %v860 = vld [vmem:[%s0 + $0xd2] sm:$0xff]
    %v861 = vld [vmem:[%s0 + $0xda] sm:$0xff]
    %v862 = vld [vmem:[%s0 + $0xe2] sm:$0xff]
    %v863 = vld [vmem:[%s0 + $0xea] sm:$0xff]
    %v864 = vld [vmem:[%s0 + $0xf2] sm:$0xff]
    %v865 = vld [vmem:[%s0 + $0xfa] sm:$0x3f]
    %s866 = scalar_lea.vmem [#allocation2], 128
    %v867 = vld [vmem:[%s866] sm:$0xff]
    %v868 = vld [vmem:[%s866 + $0x8] sm:$0xff]
    %v869 = vld [vmem:[%s866 + $0x10] sm:$0xff]
    %v870 = vld [vmem:[%s866 + $0x18] sm:$0xff]
    %v871 = vld [vmem:[%s866 + $0x20] sm:$0xff]
    %v872 = vld [vmem:[%s866 + $0x28] sm:$0xff]
    %v873 = vld [vmem:[%s866 + $0x30] sm:$0x3f]
    %v874 = vld [vmem:[%s866 + $0x38] sm:$0x3f]
    %v876 = vsel %vm176, %v834, 0
    %v879 = vsel %vm176, %v835, 0
    %v882 = vsel %vm176, %v836, 0
    %v885 = vsel %vm176, %v837, 0
    %v888 = vsel %vm176, %v838, 0
    %v891 = vsel %vm176, %v839, 0
    %v894 = vsel %vm176, %v840, 0
    %v897 = vsel %vm176, %v841, 0
    %v900 = vsel %vm176, %v842, 0
    %v903 = vsel %vm176, %v843, 0
    %v906 = vsel %vm176, %v844, 0
    %v909 = vsel %vm176, %v845, 0
    %v912 = vsel %vm176, %v846, 0
    %v915 = vsel %vm176, %v847, 0
    %v918 = vsel %vm176, %v848, 0
    %v921 = vsel %vm176, %v849, 0
    %v924 = vsel %vm176, %v850, 0
    %v927 = vsel %vm176, %v851, 0
    %v930 = vsel %vm176, %v852, 0
    %v933 = vsel %vm176, %v853, 0
    %v936 = vsel %vm176, %v854, 0
    %v939 = vsel %vm176, %v855, 0
    %v942 = vsel %vm176, %v856, 0
    %v945 = vsel %vm176, %v857, 0
    %v948 = vsel %vm176, %v858, 0
    %v951 = vsel %vm176, %v859, 0
    %v954 = vsel %vm176, %v860, 0
    %v957 = vsel %vm176, %v861, 0
    %v960 = vsel %vm176, %v862, 0
    %v963 = vsel %vm176, %v863, 0
    %v966 = vsel %vm176, %v864, 0
    %v969 = vsel %vm176, %v865, 0
    %v972 = vsel %vm273, %v873, 0
    %v975 = vsel %vm273, %v874, 0
    %977 = vmatpush.msra.mxu0 0.0
    %978 = vmatpush.msra.mxu0 0.0
    %979 = vmatpush.msra.mxu0 0.0
    %980 = vmatpush.msra.mxu0 0.0
    %981 = vmatpush.msra.mxu0 0.0
    %982 = vmatpush.msra.mxu0 0.0
    %983 = vmatpush.msra.mxu0 0.0
    %984 = vmatpush.msra.mxu0 0.0
    %985 = vmatpush.msra.mxu0 0.0
    %986 = vmatpush.msra.mxu0 0.0
    %987 = vmatpush.msra.mxu0 0.0
    %988 = vmatpush.msra.mxu0 0.0
    %989 = vmatpush.msra.mxu0 %v972
    %990 = vmatpush.msra.mxu0 %v871
    %991 = vmatpush.msra.mxu0 %v869
    %992 = vmatpush.msra.mxu0 %v867
    %993 = vmatmul.f32.gmra.mxu0 %v876
    %v994 = vpop.f32.mrf.mxu0
    %v995 = vadd.f32 0.0, %v994
    %996 = vmatmul.f32.gmra.mxu0 %v879
    %v997 = vpop.f32.mrf.mxu0
    %v998 = vadd.f32 0.0, %v997
    %999 = vmatmul.f32.gmra.mxu0 %v882
    %v1000 = vpop.f32.mrf.mxu0
    %v1001 = vadd.f32 0.0, %v1000
    %1002 = vmatmul.f32.gmra.mxu0 %v885
    %v1003 = vpop.f32.mrf.mxu0
    %v1004 = vadd.f32 0.0, %v1003
    %1005 = vmatmul.f32.gmra.mxu0 %v888
    %v1006 = vpop.f32.mrf.mxu0
    %v1007 = vadd.f32 0.0, %v1006
    %1008 = vmatmul.f32.gmra.mxu0 %v891
    %v1009 = vpop.f32.mrf.mxu0
    %v1010 = vadd.f32 0.0, %v1009
    %1011 = vmatmul.f32.gmra.mxu0 %v894
    %v1012 = vpop.f32.mrf.mxu0
    %v1013 = vadd.f32 0.0, %v1012
    %1014 = vmatmul.f32.gmra.mxu0 %v897
    %v1015 = vpop.f32.mrf.mxu0
    %v1016 = vadd.f32 0.0, %v1015
    %1017 = vmatmul.f32.gmra.mxu0 %v900
    %v1018 = vpop.f32.mrf.mxu0
    %v1019 = vadd.f32 0.0, %v1018
    %1020 = vmatmul.f32.gmra.mxu0 %v903
    %v1021 = vpop.f32.mrf.mxu0
    %v1022 = vadd.f32 0.0, %v1021
    %1023 = vmatmul.f32.gmra.mxu0 %v906
    %v1024 = vpop.f32.mrf.mxu0
    %v1025 = vadd.f32 0.0, %v1024
    %1026 = vmatmul.f32.gmra.mxu0 %v909
    %v1027 = vpop.f32.mrf.mxu0
    %v1028 = vadd.f32 0.0, %v1027
    %1029 = vmatmul.f32.gmra.mxu0 %v912
    %v1030 = vpop.f32.mrf.mxu0
    %v1031 = vadd.f32 0.0, %v1030
    %1032 = vmatmul.f32.gmra.mxu0 %v915
    %v1033 = vpop.f32.mrf.mxu0
    %v1034 = vadd.f32 0.0, %v1033
    %1035 = vmatmul.f32.gmra.mxu0 %v918
    %v1036 = vpop.f32.mrf.mxu0
    %v1037 = vadd.f32 0.0, %v1036
    %1038 = vmatmul.f32.gmra.mxu0 %v921
    %v1039 = vpop.f32.mrf.mxu0
    %v1040 = vadd.f32 0.0, %v1039
    %1041 = vmatmul.f32.gmra.mxu0 %v924
    %v1042 = vpop.f32.mrf.mxu0
    %v1043 = vadd.f32 0.0, %v1042
    %1044 = vmatmul.f32.gmra.mxu0 %v927
    %v1045 = vpop.f32.mrf.mxu0
    %v1046 = vadd.f32 0.0, %v1045
    %1047 = vmatmul.f32.gmra.mxu0 %v930
    %v1048 = vpop.f32.mrf.mxu0
    %v1049 = vadd.f32 0.0, %v1048
    %1050 = vmatmul.f32.gmra.mxu0 %v933
    %v1051 = vpop.f32.mrf.mxu0
    %v1052 = vadd.f32 0.0, %v1051
    %1053 = vmatmul.f32.gmra.mxu0 %v936
    %v1054 = vpop.f32.mrf.mxu0
    %v1055 = vadd.f32 0.0, %v1054
    %1056 = vmatmul.f32.gmra.mxu0 %v939
    %v1057 = vpop.f32.mrf.mxu0
    %v1058 = vadd.f32 0.0, %v1057
    %1059 = vmatmul.f32.gmra.mxu0 %v942
    %v1060 = vpop.f32.mrf.mxu0
    %v1061 = vadd.f32 0.0, %v1060
    %1062 = vmatmul.f32.gmra.mxu0 %v945
    %v1063 = vpop.f32.mrf.mxu0
    %v1064 = vadd.f32 0.0, %v1063
    %1065 = vmatmul.f32.gmra.mxu0 %v948
    %v1066 = vpop.f32.mrf.mxu0
    %v1067 = vadd.f32 0.0, %v1066
    %1068 = vmatmul.f32.gmra.mxu0 %v951
    %v1069 = vpop.f32.mrf.mxu0
    %v1070 = vadd.f32 0.0, %v1069
    %1071 = vmatmul.f32.gmra.mxu0 %v954
    %v1072 = vpop.f32.mrf.mxu0
    %v1073 = vadd.f32 0.0, %v1072
    %1074 = vmatmul.f32.gmra.mxu0 %v957
    %v1075 = vpop.f32.mrf.mxu0
    %v1076 = vadd.f32 0.0, %v1075
    %1077 = vmatmul.f32.gmra.mxu0 %v960
    %v1078 = vpop.f32.mrf.mxu0
    %v1079 = vadd.f32 0.0, %v1078
    %1080 = vmatmul.f32.gmra.mxu0 %v963
    %v1081 = vpop.f32.mrf.mxu0
    %v1082 = vadd.f32 0.0, %v1081
    %1083 = vmatmul.f32.gmra.mxu0 %v966
    %v1084 = vpop.f32.mrf.mxu0
    %v1085 = vadd.f32 0.0, %v1084
    %1086 = vmatmul.f32.gmra.mxu0 %v969
    %v1087 = vpop.f32.mrf.mxu0
    %v1088 = vadd.f32 0.0, %v1087
    %1089 = vdwg.mxu0
    %1090 = vmatpush.msra.mxu0 0.0
    %1091 = vmatpush.msra.mxu0 0.0
    %1092 = vmatpush.msra.mxu0 0.0
    %1093 = vmatpush.msra.mxu0 0.0
    %1094 = vmatpush.msra.mxu0 0.0
    %1095 = vmatpush.msra.mxu0 0.0
    %1096 = vmatpush.msra.mxu0 0.0
    %1097 = vmatpush.msra.mxu0 0.0
    %1098 = vmatpush.msra.mxu0 0.0
    %1099 = vmatpush.msra.mxu0 0.0
    %1100 = vmatpush.msra.mxu0 0.0
    %1101 = vmatpush.msra.mxu0 0.0
    %1102 = vmatpush.msra.mxu0 %v975
    %1103 = vmatpush.msra.mxu0 %v872
    %1104 = vmatpush.msra.mxu0 %v870
    %1105 = vmatpush.msra.mxu0 %v868
    %1106 = vmatmul.f32.gmra.mxu0 %v876
    %v1107 = vpop.f32.mrf.mxu0
    %v1108 = vadd.f32 0.0, %v1107
    %1109 = vmatmul.f32.gmra.mxu0 %v879
    %v1110 = vpop.f32.mrf.mxu0
    %v1111 = vadd.f32 0.0, %v1110
    %1112 = vmatmul.f32.gmra.mxu0 %v882
    %v1113 = vpop.f32.mrf.mxu0
    %v1114 = vadd.f32 0.0, %v1113
    %1115 = vmatmul.f32.gmra.mxu0 %v885
    %v1116 = vpop.f32.mrf.mxu0
    %v1117 = vadd.f32 0.0, %v1116
    %1118 = vmatmul.f32.gmra.mxu0 %v888
    %v1119 = vpop.f32.mrf.mxu0
    %v1120 = vadd.f32 0.0, %v1119
    %1121 = vmatmul.f32.gmra.mxu0 %v891
    %v1122 = vpop.f32.mrf.mxu0
    %v1123 = vadd.f32 0.0, %v1122
    %1124 = vmatmul.f32.gmra.mxu0 %v894
    %v1125 = vpop.f32.mrf.mxu0
    %v1126 = vadd.f32 0.0, %v1125
    %1127 = vmatmul.f32.gmra.mxu0 %v897
    %v1128 = vpop.f32.mrf.mxu0
    %v1129 = vadd.f32 0.0, %v1128
    %1130 = vmatmul.f32.gmra.mxu0 %v900
    %v1131 = vpop.f32.mrf.mxu0
    %v1132 = vadd.f32 0.0, %v1131
    %1133 = vmatmul.f32.gmra.mxu0 %v903
    %v1134 = vpop.f32.mrf.mxu0
    %v1135 = vadd.f32 0.0, %v1134
    %1136 = vmatmul.f32.gmra.mxu0 %v906
    %v1137 = vpop.f32.mrf.mxu0
    %v1138 = vadd.f32 0.0, %v1137
    %1139 = vmatmul.f32.gmra.mxu0 %v909
    %v1140 = vpop.f32.mrf.mxu0
    %v1141 = vadd.f32 0.0, %v1140
    %1142 = vmatmul.f32.gmra.mxu0 %v912
    %v1143 = vpop.f32.mrf.mxu0
    %v1144 = vadd.f32 0.0, %v1143
    %1145 = vmatmul.f32.gmra.mxu0 %v915
    %v1146 = vpop.f32.mrf.mxu0
    %v1147 = vadd.f32 0.0, %v1146
    %1148 = vmatmul.f32.gmra.mxu0 %v918
    %v1149 = vpop.f32.mrf.mxu0
    %v1150 = vadd.f32 0.0, %v1149
    %1151 = vmatmul.f32.gmra.mxu0 %v921
    %v1152 = vpop.f32.mrf.mxu0
    %v1153 = vadd.f32 0.0, %v1152
    %1154 = vmatmul.f32.gmra.mxu0 %v924
    %v1155 = vpop.f32.mrf.mxu0
    %v1156 = vadd.f32 0.0, %v1155
    %1157 = vmatmul.f32.gmra.mxu0 %v927
    %v1158 = vpop.f32.mrf.mxu0
    %v1159 = vadd.f32 0.0, %v1158
    %1160 = vmatmul.f32.gmra.mxu0 %v930
    %v1161 = vpop.f32.mrf.mxu0
    %v1162 = vadd.f32 0.0, %v1161
    %1163 = vmatmul.f32.gmra.mxu0 %v933
    %v1164 = vpop.f32.mrf.mxu0
    %v1165 = vadd.f32 0.0, %v1164
    %1166 = vmatmul.f32.gmra.mxu0 %v936
    %v1167 = vpop.f32.mrf.mxu0
    %v1168 = vadd.f32 0.0, %v1167
    %1169 = vmatmul.f32.gmra.mxu0 %v939
    %v1170 = vpop.f32.mrf.mxu0
    %v1171 = vadd.f32 0.0, %v1170
    %1172 = vmatmul.f32.gmra.mxu0 %v942
    %v1173 = vpop.f32.mrf.mxu0
    %v1174 = vadd.f32 0.0, %v1173
    %1175 = vmatmul.f32.gmra.mxu0 %v945
    %v1176 = vpop.f32.mrf.mxu0
    %v1177 = vadd.f32 0.0, %v1176
    %1178 = vmatmul.f32.gmra.mxu0 %v948
    %v1179 = vpop.f32.mrf.mxu0
    %v1180 = vadd.f32 0.0, %v1179
    %1181 = vmatmul.f32.gmra.mxu0 %v951
    %v1182 = vpop.f32.mrf.mxu0
    %v1183 = vadd.f32 0.0, %v1182
    %1184 = vmatmul.f32.gmra.mxu0 %v954
    %v1185 = vpop.f32.mrf.mxu0
    %v1186 = vadd.f32 0.0, %v1185
    %1187 = vmatmul.f32.gmra.mxu0 %v957
    %v1188 = vpop.f32.mrf.mxu0
    %v1189 = vadd.f32 0.0, %v1188
    %1190 = vmatmul.f32.gmra.mxu0 %v960
    %v1191 = vpop.f32.mrf.mxu0
    %v1192 = vadd.f32 0.0, %v1191
    %1193 = vmatmul.f32.gmra.mxu0 %v963
    %v1194 = vpop.f32.mrf.mxu0
    %v1195 = vadd.f32 0.0, %v1194
    %1196 = vmatmul.f32.gmra.mxu0 %v966
    %v1197 = vpop.f32.mrf.mxu0
    %v1198 = vadd.f32 0.0, %v1197
    %1199 = vmatmul.f32.gmra.mxu0 %v969
    %v1200 = vpop.f32.mrf.mxu0
    %v1201 = vadd.f32 0.0, %v1200
    %1202 = vdwg.mxu0
    %v1203 = vadd.f32 %v626, %v995
    %v1204 = vadd.f32 %v739, %v1108
    %v1205 = vadd.f32 %v629, %v998
    %v1206 = vadd.f32 %v742, %v1111
    %v1207 = vadd.f32 %v632, %v1001
    %v1208 = vadd.f32 %v745, %v1114
    %v1209 = vadd.f32 %v635, %v1004
    %v1210 = vadd.f32 %v748, %v1117
    %v1211 = vadd.f32 %v638, %v1007
    %v1212 = vadd.f32 %v751, %v1120
    %v1213 = vadd.f32 %v641, %v1010
    %v1214 = vadd.f32 %v754, %v1123
    %v1215 = vadd.f32 %v644, %v1013
    %v1216 = vadd.f32 %v757, %v1126
    %v1217 = vadd.f32 %v647, %v1016
    %v1218 = vadd.f32 %v760, %v1129
    %v1219 = vadd.f32 %v650, %v1019
    %v1220 = vadd.f32 %v763, %v1132
    %v1221 = vadd.f32 %v653, %v1022
    %v1222 = vadd.f32 %v766, %v1135
    %v1223 = vadd.f32 %v656, %v1025
    %v1224 = vadd.f32 %v769, %v1138
    %v1225 = vadd.f32 %v659, %v1028
    %v1226 = vadd.f32 %v772, %v1141
    %v1227 = vadd.f32 %v662, %v1031
    %v1228 = vadd.f32 %v775, %v1144
    %v1229 = vadd.f32 %v665, %v1034
    %v1230 = vadd.f32 %v778, %v1147
    %v1231 = vadd.f32 %v668, %v1037
    %v1232 = vadd.f32 %v781, %v1150
    %v1233 = vadd.f32 %v671, %v1040
    %v1234 = vadd.f32 %v784, %v1153
    %v1235 = vadd.f32 %v674, %v1043
    %v1236 = vadd.f32 %v787, %v1156
    %v1237 = vadd.f32 %v677, %v1046
    %v1238 = vadd.f32 %v790, %v1159
    %v1239 = vadd.f32 %v680, %v1049
    %v1240 = vadd.f32 %v793, %v1162
    %v1241 = vadd.f32 %v683, %v1052
    %v1242 = vadd.f32 %v796, %v1165
    %v1243 = vadd.f32 %v686, %v1055
    %v1244 = vadd.f32 %v799, %v1168
    %v1245 = vadd.f32 %v689, %v1058
    %v1246 = vadd.f32 %v802, %v1171
    %v1247 = vadd.f32 %v692, %v1061
    %v1248 = vadd.f32 %v805, %v1174
    %v1249 = vadd.f32 %v695, %v1064
    %v1250 = vadd.f32 %v808, %v1177
    %v1251 = vadd.f32 %v698, %v1067
    %v1252 = vadd.f32 %v811, %v1180
    %v1253 = vadd.f32 %v701, %v1070
    %v1254 = vadd.f32 %v814, %v1183
    %v1255 = vadd.f32 %v704, %v1073
    %v1256 = vadd.f32 %v817, %v1186
    %v1257 = vadd.f32 %v707, %v1076
    %v1258 = vadd.f32 %v820, %v1189
    %v1259 = vadd.f32 %v710, %v1079
    %v1260 = vadd.f32 %v823, %v1192
    %v1261 = vadd.f32 %v713, %v1082
    %v1262 = vadd.f32 %v826, %v1195
    %v1263 = vadd.f32 %v716, %v1085
    %v1264 = vadd.f32 %v829, %v1198
    %v1265 = vadd.f32 %v719, %v1088
    %v1266 = vadd.f32 %v832, %v1201
    %v1267 = vmax.f32 %v1203, %v1204
    %v1268 = vmax.f32 %v1205, %v1206
    %v1269 = vmax.f32 %v1207, %v1208
    %v1270 = vmax.f32 %v1209, %v1210
    %v1271 = vmax.f32 %v1211, %v1212
    %v1272 = vmax.f32 %v1213, %v1214
    %v1273 = vmax.f32 %v1215, %v1216
    %v1274 = vmax.f32 %v1217, %v1218
    %v1275 = vmax.f32 %v1219, %v1220
    %v1276 = vmax.f32 %v1221, %v1222
    %v1277 = vmax.f32 %v1223, %v1224
    %v1278 = vmax.f32 %v1225, %v1226
    %v1279 = vmax.f32 %v1227, %v1228
    %v1280 = vmax.f32 %v1229, %v1230
    %v1281 = vmax.f32 %v1231, %v1232
    %v1282 = vmax.f32 %v1233, %v1234
    %v1283 = vmax.f32 %v1235, %v1236
    %v1284 = vmax.f32 %v1237, %v1238
    %v1285 = vmax.f32 %v1239, %v1240
    %v1286 = vmax.f32 %v1241, %v1242
    %v1287 = vmax.f32 %v1243, %v1244
    %v1288 = vmax.f32 %v1245, %v1246
    %v1289 = vmax.f32 %v1247, %v1248
    %v1290 = vmax.f32 %v1249, %v1250
    %v1291 = vmax.f32 %v1251, %v1252
    %v1292 = vmax.f32 %v1253, %v1254
    %v1293 = vmax.f32 %v1255, %v1256
    %v1294 = vmax.f32 %v1257, %v1258
    %v1295 = vmax.f32 %v1259, %v1260
    %v1296 = vmax.f32 %v1261, %v1262
    %v1297 = vmax.f32 %v1263, %v1264
    %v1298 = vmax.f32 %v1265, %v1266
    %v1299 = vld [vmem:[%s2] sm:$0x1]
    %v1301 = vperm.slane %v1299, 0
    %v1303 = vadd.f32 %v1267, %v1301
    %v1304 = vadd.f32 %v1268, %v1301
    %v1305 = vadd.f32 %v1269, %v1301
    %v1306 = vadd.f32 %v1270, %v1301
    %v1307 = vadd.f32 %v1271, %v1301
    %v1308 = vadd.f32 %v1272, %v1301
    %v1309 = vadd.f32 %v1273, %v1301
    %v1310 = vadd.f32 %v1274, %v1301
    %v1311 = vadd.f32 %v1275, %v1301
    %v1312 = vadd.f32 %v1276, %v1301
    %v1313 = vadd.f32 %v1277, %v1301
    %v1314 = vadd.f32 %v1278, %v1301
    %v1315 = vadd.f32 %v1279, %v1301
    %v1316 = vadd.f32 %v1280, %v1301
    %v1317 = vadd.f32 %v1281, %v1301
    %v1318 = vadd.f32 %v1282, %v1301
    %v1319 = vadd.f32 %v1283, %v1301
    %v1320 = vadd.f32 %v1284, %v1301
    %v1321 = vadd.f32 %v1285, %v1301
    %v1322 = vadd.f32 %v1286, %v1301
    %v1323 = vadd.f32 %v1287, %v1301
    %v1324 = vadd.f32 %v1288, %v1301
    %v1325 = vadd.f32 %v1289, %v1301
    %v1326 = vadd.f32 %v1290, %v1301
    %v1327 = vadd.f32 %v1291, %v1301
    %v1328 = vadd.f32 %v1292, %v1301
    %v1329 = vadd.f32 %v1293, %v1301
    %v1330 = vadd.f32 %v1294, %v1301
    %v1331 = vadd.f32 %v1295, %v1301
    %v1332 = vadd.f32 %v1296, %v1301
    %v1333 = vadd.f32 %v1297, %v1301
    %v1334 = vadd.f32 %v1298, %v1301
    %v1335 = vld [vmem:[%s3] sm:$0xff]
    %v1336 = vld [vmem:[%s3 + $0x8] sm:$0xff]
    %v1337 = vld [vmem:[%s3 + $0x10] sm:$0xff]
    %v1338 = vld [vmem:[%s3 + $0x18] sm:$0xff]
    %v1339 = vld [vmem:[%s3 + $0x20] sm:$0xff]
    %v1340 = vld [vmem:[%s3 + $0x28] sm:$0xff]
    %v1341 = vld [vmem:[%s3 + $0x30] sm:$0xff]
    %v1342 = vld [vmem:[%s3 + $0x38] sm:$0xff]
    %v1343 = vld [vmem:[%s3 + $0x40] sm:$0xff]
    %v1344 = vld [vmem:[%s3 + $0x48] sm:$0xff]
    %v1345 = vld [vmem:[%s3 + $0x50] sm:$0xff]
    %v1346 = vld [vmem:[%s3 + $0x58] sm:$0xff]
    %v1347 = vld [vmem:[%s3 + $0x60] sm:$0xff]
    %v1348 = vld [vmem:[%s3 + $0x68] sm:$0xff]
    %v1349 = vld [vmem:[%s3 + $0x70] sm:$0xff]
    %v1350 = vld [vmem:[%s3 + $0x78] sm:$0xff]
    %v1351 = vld [vmem:[%s3 + $0x80] sm:$0xff]
    %v1352 = vld [vmem:[%s3 + $0x88] sm:$0xff]
    %v1353 = vld [vmem:[%s3 + $0x90] sm:$0xff]
    %v1354 = vld [vmem:[%s3 + $0x98] sm:$0xff]
    %v1355 = vld [vmem:[%s3 + $0xa0] sm:$0xff]
    %v1356 = vld [vmem:[%s3 + $0xa8] sm:$0xff]
    %v1357 = vld [vmem:[%s3 + $0xb0] sm:$0xff]
    %v1358 = vld [vmem:[%s3 + $0xb8] sm:$0xff]
    %v1359 = vld [vmem:[%s3 + $0xc0] sm:$0xff]
    %v1360 = vld [vmem:[%s3 + $0xc8] sm:$0xff]
    %v1361 = vld [vmem:[%s3 + $0xd0] sm:$0xff]
    %v1362 = vld [vmem:[%s3 + $0xd8] sm:$0xff]
    %v1363 = vld [vmem:[%s3 + $0xe0] sm:$0xff]
    %v1364 = vld [vmem:[%s3 + $0xe8] sm:$0xff]
    %v1365 = vld [vmem:[%s3 + $0xf0] sm:$0xff]
    %v1366 = vld [vmem:[%s3 + $0xf8] sm:$0xff]
    %v1367 = vld [vmem:[%s3 + $0x100] sm:$0xff]
    %v1368 = vld [vmem:[%s3 + $0x108] sm:$0xff]
    %v1369 = vld [vmem:[%s3 + $0x110] sm:$0xff]
    %v1370 = vld [vmem:[%s3 + $0x118] sm:$0xff]
    %v1371 = vld [vmem:[%s3 + $0x120] sm:$0xff]
    %v1372 = vld [vmem:[%s3 + $0x128] sm:$0xff]
    %v1373 = vld [vmem:[%s3 + $0x130] sm:$0xff]
    %v1374 = vld [vmem:[%s3 + $0x138] sm:$0xff]
    %v1375 = vld [vmem:[%s3 + $0x140] sm:$0xff]
    %v1376 = vld [vmem:[%s3 + $0x148] sm:$0xff]
    %v1377 = vld [vmem:[%s3 + $0x150] sm:$0xff]
    %v1378 = vld [vmem:[%s3 + $0x158] sm:$0xff]
    %v1379 = vld [vmem:[%s3 + $0x160] sm:$0xff]
    %v1380 = vld [vmem:[%s3 + $0x168] sm:$0xff]
    %v1381 = vld [vmem:[%s3 + $0x170] sm:$0xff]
    %v1382 = vld [vmem:[%s3 + $0x178] sm:$0xff]
    %v1383 = vld [vmem:[%s3 + $0x180] sm:$0xff]
    %v1384 = vld [vmem:[%s3 + $0x188] sm:$0xff]
    %v1385 = vld [vmem:[%s3 + $0x190] sm:$0xff]
    %v1386 = vld [vmem:[%s3 + $0x198] sm:$0xff]
    %v1387 = vld [vmem:[%s3 + $0x1a0] sm:$0xff]
    %v1388 = vld [vmem:[%s3 + $0x1a8] sm:$0xff]
    %v1389 = vld [vmem:[%s3 + $0x1b0] sm:$0xff]
    %v1390 = vld [vmem:[%s3 + $0x1b8] sm:$0xff]
    %v1391 = vld [vmem:[%s3 + $0x1c0] sm:$0xff]
    %v1392 = vld [vmem:[%s3 + $0x1c8] sm:$0xff]
    %v1393 = vld [vmem:[%s3 + $0x1d0] sm:$0xff]
    %v1394 = vld [vmem:[%s3 + $0x1d8] sm:$0xff]
    %v1395 = vld [vmem:[%s3 + $0x1e0] sm:$0xff]
    %v1396 = vld [vmem:[%s3 + $0x1e8] sm:$0xff]
    %v1397 = vld [vmem:[%s3 + $0x1f0] sm:$0xff]
    %v1398 = vld [vmem:[%s3 + $0x1f8] sm:$0xff]
    %vm1399 = vcmask 1031168
    %v1401 = vsel %vm1399, %v1336, 0
    %v1404 = vsel %vm1399, %v1338, 0
    %v1407 = vsel %vm1399, %v1340, 0
    %v1410 = vsel %vm1399, %v1342, 0
    %v1413 = vsel %vm1399, %v1344, 0
    %v1416 = vsel %vm1399, %v1346, 0
    %v1419 = vsel %vm1399, %v1348, 0
    %v1422 = vsel %vm1399, %v1350, 0
    %v1425 = vsel %vm1399, %v1352, 0
    %v1428 = vsel %vm1399, %v1354, 0
    %v1431 = vsel %vm1399, %v1356, 0
    %v1434 = vsel %vm1399, %v1358, 0
    %v1437 = vsel %vm1399, %v1360, 0
    %v1440 = vsel %vm1399, %v1362, 0
    %v1443 = vsel %vm1399, %v1364, 0
    %v1446 = vsel %vm1399, %v1366, 0
    %v1449 = vsel %vm1399, %v1368, 0
    %v1452 = vsel %vm1399, %v1370, 0
    %v1455 = vsel %vm1399, %v1372, 0
    %v1458 = vsel %vm1399, %v1374, 0
    %v1461 = vsel %vm1399, %v1376, 0
    %v1464 = vsel %vm1399, %v1378, 0
    %v1467 = vsel %vm1399, %v1380, 0
    %v1470 = vsel %vm1399, %v1382, 0
    %v1473 = vsel %vm1399, %v1384, 0
    %v1476 = vsel %vm1399, %v1386, 0
    %v1479 = vsel %vm1399, %v1388, 0
    %v1482 = vsel %vm1399, %v1390, 0
    %v1485 = vsel %vm1399, %v1392, 0
    %v1488 = vsel %vm1399, %v1394, 0
    %v1491 = vsel %vm1399, %v1396, 0
    %v1494 = vsel %vm1399, %v1398, 0
    %v1497 = vsel %vm273, %v1334, 0
    %1499 = vmatpush.msra.mxu0 %v1318
    %1500 = vmatpush.msra.mxu0 %v1317
    %1501 = vmatpush.msra.mxu0 %v1316
    %1502 = vmatpush.msra.mxu0 %v1315
    %1503 = vmatpush.msra.mxu0 %v1314
    %1504 = vmatpush.msra.mxu0 %v1313
    %1505 = vmatpush.msra.mxu0 %v1312
    %1506 = vmatpush.msra.mxu0 %v1311
    %1507 = vmatpush.msra.mxu0 %v1310
    %1508 = vmatpush.msra.mxu0 %v1309
    %1509 = vmatpush.msra.mxu0 %v1308
    %1510 = vmatpush.msra.mxu0 %v1307
    %1511 = vmatpush.msra.mxu0 %v1306
    %1512 = vmatpush.msra.mxu0 %v1305
    %1513 = vmatpush.msra.mxu0 %v1304
    %1514 = vmatpush.msra.mxu0 %v1303
    %1515 = vmatmul.f32.gmra.mxu0 %v1335
    %v1516 = vpop.f32.mrf.mxu0
    %v1517 = vadd.f32 0.0, %v1516
    %1518 = vmatmul.f32.gmra.mxu0 %v1337
    %v1519 = vpop.f32.mrf.mxu0
    %v1520 = vadd.f32 0.0, %v1519
    %1521 = vmatmul.f32.gmra.mxu0 %v1339
    %v1522 = vpop.f32.mrf.mxu0
    %v1523 = vadd.f32 0.0, %v1522
    %1524 = vmatmul.f32.gmra.mxu0 %v1341
    %v1525 = vpop.f32.mrf.mxu0
    %v1526 = vadd.f32 0.0, %v1525
    %1527 = vmatmul.f32.gmra.mxu0 %v1343
    %v1528 = vpop.f32.mrf.mxu0
    %v1529 = vadd.f32 0.0, %v1528
    %1530 = vmatmul.f32.gmra.mxu0 %v1345
    %v1531 = vpop.f32.mrf.mxu0
    %v1532 = vadd.f32 0.0, %v1531
    %1533 = vmatmul.f32.gmra.mxu0 %v1347
    %v1534 = vpop.f32.mrf.mxu0
    %v1535 = vadd.f32 0.0, %v1534
    %1536 = vmatmul.f32.gmra.mxu0 %v1349
    %v1537 = vpop.f32.mrf.mxu0
    %v1538 = vadd.f32 0.0, %v1537
    %1539 = vmatmul.f32.gmra.mxu0 %v1351
    %v1540 = vpop.f32.mrf.mxu0
    %v1541 = vadd.f32 0.0, %v1540
    %1542 = vmatmul.f32.gmra.mxu0 %v1353
    %v1543 = vpop.f32.mrf.mxu0
    %v1544 = vadd.f32 0.0, %v1543
    %1545 = vmatmul.f32.gmra.mxu0 %v1355
    %v1546 = vpop.f32.mrf.mxu0
    %v1547 = vadd.f32 0.0, %v1546
    %1548 = vmatmul.f32.gmra.mxu0 %v1357
    %v1549 = vpop.f32.mrf.mxu0
    %v1550 = vadd.f32 0.0, %v1549
    %1551 = vmatmul.f32.gmra.mxu0 %v1359
    %v1552 = vpop.f32.mrf.mxu0
    %v1553 = vadd.f32 0.0, %v1552
    %1554 = vmatmul.f32.gmra.mxu0 %v1361
    %v1555 = vpop.f32.mrf.mxu0
    %v1556 = vadd.f32 0.0, %v1555
    %1557 = vmatmul.f32.gmra.mxu0 %v1363
    %v1558 = vpop.f32.mrf.mxu0
    %v1559 = vadd.f32 0.0, %v1558
    %1560 = vmatmul.f32.gmra.mxu0 %v1365
    %v1561 = vpop.f32.mrf.mxu0
    %v1562 = vadd.f32 0.0, %v1561
    %1563 = vmatmul.f32.gmra.mxu0 %v1367
    %v1564 = vpop.f32.mrf.mxu0
    %v1565 = vadd.f32 0.0, %v1564
    %1566 = vmatmul.f32.gmra.mxu0 %v1369
    %v1567 = vpop.f32.mrf.mxu0
    %v1568 = vadd.f32 0.0, %v1567
    %1569 = vmatmul.f32.gmra.mxu0 %v1371
    %v1570 = vpop.f32.mrf.mxu0
    %v1571 = vadd.f32 0.0, %v1570
    %1572 = vmatmul.f32.gmra.mxu0 %v1373
    %v1573 = vpop.f32.mrf.mxu0
    %v1574 = vadd.f32 0.0, %v1573
    %1575 = vmatmul.f32.gmra.mxu0 %v1375
    %v1576 = vpop.f32.mrf.mxu0
    %v1577 = vadd.f32 0.0, %v1576
    %1578 = vmatmul.f32.gmra.mxu0 %v1377
    %v1579 = vpop.f32.mrf.mxu0
    %v1580 = vadd.f32 0.0, %v1579
    %1581 = vmatmul.f32.gmra.mxu0 %v1379
    %v1582 = vpop.f32.mrf.mxu0
    %v1583 = vadd.f32 0.0, %v1582
    %1584 = vmatmul.f32.gmra.mxu0 %v1381
    %v1585 = vpop.f32.mrf.mxu0
    %v1586 = vadd.f32 0.0, %v1585
    %1587 = vmatmul.f32.gmra.mxu0 %v1383
    %v1588 = vpop.f32.mrf.mxu0
    %v1589 = vadd.f32 0.0, %v1588
    %1590 = vmatmul.f32.gmra.mxu0 %v1385
    %v1591 = vpop.f32.mrf.mxu0
    %v1592 = vadd.f32 0.0, %v1591
    %1593 = vmatmul.f32.gmra.mxu0 %v1387
    %v1594 = vpop.f32.mrf.mxu0
    %v1595 = vadd.f32 0.0, %v1594
    %1596 = vmatmul.f32.gmra.mxu0 %v1389
    %v1597 = vpop.f32.mrf.mxu0
    %v1598 = vadd.f32 0.0, %v1597
    %1599 = vmatmul.f32.gmra.mxu0 %v1391
    %v1600 = vpop.f32.mrf.mxu0
    %v1601 = vadd.f32 0.0, %v1600
    %1602 = vmatmul.f32.gmra.mxu0 %v1393
    %v1603 = vpop.f32.mrf.mxu0
    %v1604 = vadd.f32 0.0, %v1603
    %1605 = vmatmul.f32.gmra.mxu0 %v1395
    %v1606 = vpop.f32.mrf.mxu0
    %v1607 = vadd.f32 0.0, %v1606
    %1608 = vmatmul.f32.gmra.mxu0 %v1397
    %v1609 = vpop.f32.mrf.mxu0
    %v1610 = vadd.f32 0.0, %v1609
    %1611 = vdwg.mxu0
    %1612 = vmatpush.msra.mxu0 %v1497
    %1613 = vmatpush.msra.mxu0 %v1333
    %1614 = vmatpush.msra.mxu0 %v1332
    %1615 = vmatpush.msra.mxu0 %v1331
    %1616 = vmatpush.msra.mxu0 %v1330
    %1617 = vmatpush.msra.mxu0 %v1329
    %1618 = vmatpush.msra.mxu0 %v1328
    %1619 = vmatpush.msra.mxu0 %v1327
    %1620 = vmatpush.msra.mxu0 %v1326
    %1621 = vmatpush.msra.mxu0 %v1325
    %1622 = vmatpush.msra.mxu0 %v1324
    %1623 = vmatpush.msra.mxu0 %v1323
    %1624 = vmatpush.msra.mxu0 %v1322
    %1625 = vmatpush.msra.mxu0 %v1321
    %1626 = vmatpush.msra.mxu0 %v1320
    %1627 = vmatpush.msra.mxu0 %v1319
    %1628 = vmatmul.f32.gmra.mxu0 %v1401
    %v1629 = vpop.f32.mrf.mxu0
    %v1630 = vadd.f32 %v1517, %v1629
    %1631 = vmatmul.f32.gmra.mxu0 %v1404
    %v1632 = vpop.f32.mrf.mxu0
    %v1633 = vadd.f32 %v1520, %v1632
    %1634 = vmatmul.f32.gmra.mxu0 %v1407
    %v1635 = vpop.f32.mrf.mxu0
    %v1636 = vadd.f32 %v1523, %v1635
    %1637 = vmatmul.f32.gmra.mxu0 %v1410
    %v1638 = vpop.f32.mrf.mxu0
    %v1639 = vadd.f32 %v1526, %v1638
    %1640 = vmatmul.f32.gmra.mxu0 %v1413
    %v1641 = vpop.f32.mrf.mxu0
    %v1642 = vadd.f32 %v1529, %v1641
    %1643 = vmatmul.f32.gmra.mxu0 %v1416
    %v1644 = vpop.f32.mrf.mxu0
    %v1645 = vadd.f32 %v1532, %v1644
    %1646 = vmatmul.f32.gmra.mxu0 %v1419
    %v1647 = vpop.f32.mrf.mxu0
    %v1648 = vadd.f32 %v1535, %v1647
    %1649 = vmatmul.f32.gmra.mxu0 %v1422
    %v1650 = vpop.f32.mrf.mxu0
    %v1651 = vadd.f32 %v1538, %v1650
    %1652 = vmatmul.f32.gmra.mxu0 %v1425
    %v1653 = vpop.f32.mrf.mxu0
    %v1654 = vadd.f32 %v1541, %v1653
    %1655 = vmatmul.f32.gmra.mxu0 %v1428
    %v1656 = vpop.f32.mrf.mxu0
    %v1657 = vadd.f32 %v1544, %v1656
    %1658 = vmatmul.f32.gmra.mxu0 %v1431
    %v1659 = vpop.f32.mrf.mxu0
    %v1660 = vadd.f32 %v1547, %v1659
    %1661 = vmatmul.f32.gmra.mxu0 %v1434
    %v1662 = vpop.f32.mrf.mxu0
    %v1663 = vadd.f32 %v1550, %v1662
    %1664 = vmatmul.f32.gmra.mxu0 %v1437
    %v1665 = vpop.f32.mrf.mxu0
    %v1666 = vadd.f32 %v1553, %v1665
    %1667 = vmatmul.f32.gmra.mxu0 %v1440
    %v1668 = vpop.f32.mrf.mxu0
    %v1669 = vadd.f32 %v1556, %v1668
    %1670 = vmatmul.f32.gmra.mxu0 %v1443
    %v1671 = vpop.f32.mrf.mxu0
    %v1672 = vadd.f32 %v1559, %v1671
    %1673 = vmatmul.f32.gmra.mxu0 %v1446
    %v1674 = vpop.f32.mrf.mxu0
    %v1675 = vadd.f32 %v1562, %v1674
    %1676 = vmatmul.f32.gmra.mxu0 %v1449
    %v1677 = vpop.f32.mrf.mxu0
    %v1678 = vadd.f32 %v1565, %v1677
    %1679 = vmatmul.f32.gmra.mxu0 %v1452
    %v1680 = vpop.f32.mrf.mxu0
    %v1681 = vadd.f32 %v1568, %v1680
    %1682 = vmatmul.f32.gmra.mxu0 %v1455
    %v1683 = vpop.f32.mrf.mxu0
    %v1684 = vadd.f32 %v1571, %v1683
    %1685 = vmatmul.f32.gmra.mxu0 %v1458
    %v1686 = vpop.f32.mrf.mxu0
    %v1687 = vadd.f32 %v1574, %v1686
    %1688 = vmatmul.f32.gmra.mxu0 %v1461
    %v1689 = vpop.f32.mrf.mxu0
    %v1690 = vadd.f32 %v1577, %v1689
    %1691 = vmatmul.f32.gmra.mxu0 %v1464
    %v1692 = vpop.f32.mrf.mxu0
    %v1693 = vadd.f32 %v1580, %v1692
    %1694 = vmatmul.f32.gmra.mxu0 %v1467
    %v1695 = vpop.f32.mrf.mxu0
    %v1696 = vadd.f32 %v1583, %v1695
    %1697 = vmatmul.f32.gmra.mxu0 %v1470
    %v1698 = vpop.f32.mrf.mxu0
    %v1699 = vadd.f32 %v1586, %v1698
    %1700 = vmatmul.f32.gmra.mxu0 %v1473
    %v1701 = vpop.f32.mrf.mxu0
    %v1702 = vadd.f32 %v1589, %v1701
    %1703 = vmatmul.f32.gmra.mxu0 %v1476
    %v1704 = vpop.f32.mrf.mxu0
    %v1705 = vadd.f32 %v1592, %v1704
    %1706 = vmatmul.f32.gmra.mxu0 %v1479
    %v1707 = vpop.f32.mrf.mxu0
    %v1708 = vadd.f32 %v1595, %v1707
    %1709 = vmatmul.f32.gmra.mxu0 %v1482
    %v1710 = vpop.f32.mrf.mxu0
    %v1711 = vadd.f32 %v1598, %v1710
    %1712 = vmatmul.f32.gmra.mxu0 %v1485
    %v1713 = vpop.f32.mrf.mxu0
    %v1714 = vadd.f32 %v1601, %v1713
    %1715 = vmatmul.f32.gmra.mxu0 %v1488
    %v1716 = vpop.f32.mrf.mxu0
    %v1717 = vadd.f32 %v1604, %v1716
    %1718 = vmatmul.f32.gmra.mxu0 %v1491
    %v1719 = vpop.f32.mrf.mxu0
    %v1720 = vadd.f32 %v1607, %v1719
    %1721 = vmatmul.f32.gmra.mxu0 %v1494
    %v1722 = vpop.f32.mrf.mxu0
    %v1723 = vadd.f32 %v1610, %v1722
    %1724 = vdwg.mxu0
    %v1725 = vmax.f32 %v1630, %v1678
    %v1726 = vmax.f32 %v1633, %v1681
    %v1727 = vmax.f32 %v1636, %v1684
    %v1728 = vmax.f32 %v1639, %v1687
    %v1729 = vmax.f32 %v1642, %v1690
    %v1730 = vmax.f32 %v1645, %v1693
    %v1731 = vmax.f32 %v1648, %v1696
    %v1732 = vmax.f32 %v1651, %v1699
    %v1733 = vmax.f32 %v1654, %v1702
    %v1734 = vmax.f32 %v1657, %v1705
    %v1735 = vmax.f32 %v1660, %v1708
    %v1736 = vmax.f32 %v1663, %v1711
    %v1737 = vmax.f32 %v1666, %v1714
    %v1738 = vmax.f32 %v1669, %v1717
    %v1739 = vmax.f32 %v1672, %v1720
    %v1740 = vmax.f32 %v1675, %v1723
    %v1741 = vmax.f32 %v1725, 0.0
    %v1742 = vmax.f32 %v1726, 0.0
    %v1743 = vmax.f32 %v1727, 0.0
    %v1744 = vmax.f32 %v1728, 0.0
    %v1745 = vmax.f32 %v1729, 0.0
    %v1746 = vmax.f32 %v1730, 0.0
    %v1747 = vmax.f32 %v1731, 0.0
    %v1748 = vmax.f32 %v1732, 0.0
    %v1749 = vmax.f32 %v1733, 0.0
    %v1750 = vmax.f32 %v1734, 0.0
    %v1751 = vmax.f32 %v1735, 0.0
    %v1752 = vmax.f32 %v1736, 0.0
    %v1753 = vmax.f32 %v1737, 0.0
    %v1754 = vmax.f32 %v1738, 0.0
    %v1755 = vmax.f32 %v1739, 0.0
    %v1756 = vmax.f32 %v1740, 0.0
    %v1757 = vld [vmem:[#allocation4] sm:$0xff]
    %v1758 = vld [vmem:[#allocation4 + $0x8] sm:$0xff]
    %v1759 = vld [vmem:[#allocation4 + $0x10] sm:$0xff]
    %v1760 = vld [vmem:[#allocation4 + $0x18] sm:$0xff]
    %v1761 = vld [vmem:[#allocation4 + $0x20] sm:$0xff]
    %v1762 = vld [vmem:[#allocation4 + $0x28] sm:$0xff]
    %v1763 = vld [vmem:[#allocation4 + $0x30] sm:$0xff]
    %v1764 = vld [vmem:[#allocation4 + $0x38] sm:$0xff]
    %v1765 = vld [vmem:[#allocation4 + $0x40] sm:$0xff]
    %v1766 = vld [vmem:[#allocation4 + $0x48] sm:$0xff]
    %v1767 = vld [vmem:[#allocation4 + $0x50] sm:$0xff]
    %v1768 = vld [vmem:[#allocation4 + $0x58] sm:$0xff]
    %v1769 = vld [vmem:[#allocation4 + $0x60] sm:$0xff]
    %v1770 = vld [vmem:[#allocation4 + $0x68] sm:$0xff]
    %v1771 = vld [vmem:[#allocation4 + $0x70] sm:$0xff]
    %v1772 = vld [vmem:[#allocation4 + $0x78] sm:$0xff]
    %v1773 = vld [vmem:[#allocation4 + $0x80] sm:$0xff]
    %v1774 = vld [vmem:[#allocation4 + $0x88] sm:$0xff]
    %v1775 = vld [vmem:[#allocation4 + $0x90] sm:$0xff]
    %v1776 = vld [vmem:[#allocation4 + $0x98] sm:$0xff]
    %v1777 = vld [vmem:[#allocation4 + $0xa0] sm:$0xff]
    %v1778 = vld [vmem:[#allocation4 + $0xa8] sm:$0xff]
    %v1779 = vld [vmem:[#allocation4 + $0xb0] sm:$0xff]
    %v1780 = vld [vmem:[#allocation4 + $0xb8] sm:$0xff]
    %v1781 = vld [vmem:[#allocation4 + $0xc0] sm:$0xff]
    %v1782 = vld [vmem:[#allocation4 + $0xc8] sm:$0xff]
    %v1783 = vld [vmem:[#allocation4 + $0xd0] sm:$0xff]
    %v1784 = vld [vmem:[#allocation4 + $0xd8] sm:$0xff]
    %v1785 = vld [vmem:[#allocation4 + $0xe0] sm:$0xff]
    %v1786 = vld [vmem:[#allocation4 + $0xe8] sm:$0xff]
    %v1787 = vld [vmem:[#allocation4 + $0xf0] sm:$0xff]
    %v1788 = vld [vmem:[#allocation4 + $0xf8] sm:$0xff]
    %s1789 = scalar_lea.vmem [#allocation4], 256
    %v1790 = vld [vmem:[%s1789] sm:$0xff]
    %v1791 = vld [vmem:[%s1789 + $0x8] sm:$0xff]
    %v1792 = vld [vmem:[%s1789 + $0x10] sm:$0xff]
    %v1793 = vld [vmem:[%s1789 + $0x18] sm:$0xff]
    %v1794 = vld [vmem:[%s1789 + $0x20] sm:$0xff]
    %v1795 = vld [vmem:[%s1789 + $0x28] sm:$0xff]
    %v1796 = vld [vmem:[%s1789 + $0x30] sm:$0xff]
    %v1797 = vld [vmem:[%s1789 + $0x38] sm:$0xff]
    %v1798 = vld [vmem:[%s1789 + $0x40] sm:$0xff]
    %v1799 = vld [vmem:[%s1789 + $0x48] sm:$0xff]
    %v1800 = vld [vmem:[%s1789 + $0x50] sm:$0xff]
    %v1801 = vld [vmem:[%s1789 + $0x58] sm:$0xff]
    %v1802 = vld [vmem:[%s1789 + $0x60] sm:$0xff]
    %v1803 = vld [vmem:[%s1789 + $0x68] sm:$0xff]
    %v1804 = vld [vmem:[%s1789 + $0x70] sm:$0xff]
    %v1805 = vld [vmem:[%s1789 + $0x78] sm:$0xff]
    %v1806 = vld [vmem:[%s1789 + $0x80] sm:$0xff]
    %v1807 = vld [vmem:[%s1789 + $0x88] sm:$0xff]
    %v1808 = vld [vmem:[%s1789 + $0x90] sm:$0xff]
    %v1809 = vld [vmem:[%s1789 + $0x98] sm:$0xff]
    %v1810 = vld [vmem:[%s1789 + $0xa0] sm:$0xff]
    %v1811 = vld [vmem:[%s1789 + $0xa8] sm:$0xff]
    %v1812 = vld [vmem:[%s1789 + $0xb0] sm:$0xff]
    %v1813 = vld [vmem:[%s1789 + $0xb8] sm:$0xff]
    %v1814 = vld [vmem:[%s1789 + $0xc0] sm:$0xff]
    %v1815 = vld [vmem:[%s1789 + $0xc8] sm:$0xff]
    %v1816 = vld [vmem:[%s1789 + $0xd0] sm:$0xff]
    %v1817 = vld [vmem:[%s1789 + $0xd8] sm:$0xff]
    %v1818 = vld [vmem:[%s1789 + $0xe0] sm:$0xff]
    %v1819 = vld [vmem:[%s1789 + $0xe8] sm:$0xff]
    %v1820 = vld [vmem:[%s1789 + $0xf0] sm:$0xff]
    %v1821 = vld [vmem:[%s1789 + $0xf8] sm:$0xff]
    %vm1838 = vcmask 1046528
    %v1839 = vrot.slane %v1741, 1
    %v1840 = vrot.slane %v1742, 1
    %v1841 = vsel %vm1838, %v1839, %v1840
    %v1842 = vrot.slane %v1743, 1
    %v1843 = vsel %vm1838, %v1840, %v1842
    %v1844 = vrot.slane %v1744, 1
    %v1845 = vsel %vm1838, %v1842, %v1844
    %v1846 = vrot.slane %v1745, 1
    %v1847 = vsel %vm1838, %v1844, %v1846
    %v1848 = vrot.slane %v1746, 1
    %v1849 = vsel %vm1838, %v1846, %v1848
    %v1850 = vrot.slane %v1747, 1
    %v1851 = vsel %vm1838, %v1848, %v1850
    %v1852 = vrot.slane %v1748, 1
    %v1853 = vsel %vm1838, %v1850, %v1852
    %v1854 = vrot.slane %v1749, 1
    %v1855 = vsel %vm1838, %v1852, %v1854
    %v1856 = vrot.slane %v1750, 1
    %v1857 = vsel %vm1838, %v1854, %v1856
    %v1858 = vrot.slane %v1751, 1
    %v1859 = vsel %vm1838, %v1856, %v1858
    %v1860 = vrot.slane %v1752, 1
    %v1861 = vsel %vm1838, %v1858, %v1860
    %v1862 = vrot.slane %v1753, 1
    %v1863 = vsel %vm1838, %v1860, %v1862
    %v1864 = vrot.slane %v1754, 1
    %v1865 = vsel %vm1838, %v1862, %v1864
    %v1866 = vrot.slane %v1755, 1
    %v1867 = vsel %vm1838, %v1864, %v1866
    %v1868 = vrot.slane %v1756, 1
    %v1869 = vsel %vm1838, %v1866, %v1868
    %1886 = vmatpush.msra.mxu0 %v1820
    %1887 = vmatpush.msra.mxu0 %v1818
    %1888 = vmatpush.msra.mxu0 %v1816
    %1889 = vmatpush.msra.mxu0 %v1814
    %1890 = vmatpush.msra.mxu0 %v1812
    %1891 = vmatpush.msra.mxu0 %v1810
    %1892 = vmatpush.msra.mxu0 %v1808
    %1893 = vmatpush.msra.mxu0 %v1806
    %1894 = vmatpush.msra.mxu0 %v1804
    %1895 = vmatpush.msra.mxu0 %v1802
    %1896 = vmatpush.msra.mxu0 %v1800
    %1897 = vmatpush.msra.mxu0 %v1798
    %1898 = vmatpush.msra.mxu0 %v1796
    %1899 = vmatpush.msra.mxu0 %v1794
    %1900 = vmatpush.msra.mxu0 %v1792
    %1901 = vmatpush.msra.mxu0 %v1790
    %1902 = vmatmul.f32.gmra.mxu0 %v1841
    %v1903 = vpop.f32.mrf.mxu0
    %v1904 = vadd.f32 0.0, %v1903
    %1905 = vmatmul.f32.gmra.mxu0 %v1843
    %v1906 = vpop.f32.mrf.mxu0
    %v1907 = vadd.f32 0.0, %v1906
    %1908 = vmatmul.f32.gmra.mxu0 %v1845
    %v1909 = vpop.f32.mrf.mxu0
    %v1910 = vadd.f32 0.0, %v1909
    %1911 = vmatmul.f32.gmra.mxu0 %v1847
    %v1912 = vpop.f32.mrf.mxu0
    %v1913 = vadd.f32 0.0, %v1912
    %1914 = vmatmul.f32.gmra.mxu0 %v1849
    %v1915 = vpop.f32.mrf.mxu0
    %v1916 = vadd.f32 0.0, %v1915
    %1917 = vmatmul.f32.gmra.mxu0 %v1851
    %v1918 = vpop.f32.mrf.mxu0
    %v1919 = vadd.f32 0.0, %v1918
    %1920 = vmatmul.f32.gmra.mxu0 %v1853
    %v1921 = vpop.f32.mrf.mxu0
    %v1922 = vadd.f32 0.0, %v1921
    %1923 = vmatmul.f32.gmra.mxu0 %v1855
    %v1924 = vpop.f32.mrf.mxu0
    %v1925 = vadd.f32 0.0, %v1924
    %1926 = vmatmul.f32.gmra.mxu0 %v1857
    %v1927 = vpop.f32.mrf.mxu0
    %v1928 = vadd.f32 0.0, %v1927
    %1929 = vmatmul.f32.gmra.mxu0 %v1859
    %v1930 = vpop.f32.mrf.mxu0
    %v1931 = vadd.f32 0.0, %v1930
    %1932 = vmatmul.f32.gmra.mxu0 %v1861
    %v1933 = vpop.f32.mrf.mxu0
    %v1934 = vadd.f32 0.0, %v1933
    %1935 = vmatmul.f32.gmra.mxu0 %v1863
    %v1936 = vpop.f32.mrf.mxu0
    %v1937 = vadd.f32 0.0, %v1936
    %1938 = vmatmul.f32.gmra.mxu0 %v1865
    %v1939 = vpop.f32.mrf.mxu0
    %v1940 = vadd.f32 0.0, %v1939
    %1941 = vmatmul.f32.gmra.mxu0 %v1867
    %v1942 = vpop.f32.mrf.mxu0
    %v1943 = vadd.f32 0.0, %v1942
    %1944 = vmatmul.f32.gmra.mxu0 %v1869
    %v1945 = vpop.f32.mrf.mxu0
    %v1946 = vadd.f32 0.0, %v1945
    %1947 = vmatmul.f32.gmra.mxu0 %v1868
    %v1948 = vpop.f32.mrf.mxu0
    %v1949 = vadd.f32 0.0, %v1948
    %1950 = vdwg.mxu0
    %1951 = vmatpush.msra.mxu0 %v1821
    %1952 = vmatpush.msra.mxu0 %v1819
    %1953 = vmatpush.msra.mxu0 %v1817
    %1954 = vmatpush.msra.mxu0 %v1815
    %1955 = vmatpush.msra.mxu0 %v1813
    %1956 = vmatpush.msra.mxu0 %v1811
    %1957 = vmatpush.msra.mxu0 %v1809
    %1958 = vmatpush.msra.mxu0 %v1807
    %1959 = vmatpush.msra.mxu0 %v1805
    %1960 = vmatpush.msra.mxu0 %v1803
    %1961 = vmatpush.msra.mxu0 %v1801
    %1962 = vmatpush.msra.mxu0 %v1799
    %1963 = vmatpush.msra.mxu0 %v1797
    %1964 = vmatpush.msra.mxu0 %v1795
    %1965 = vmatpush.msra.mxu0 %v1793
    %1966 = vmatpush.msra.mxu0 %v1791
    %1967 = vmatmul.f32.gmra.mxu0 %v1841
    %v1968 = vpop.f32.mrf.mxu0
    %v1969 = vadd.f32 0.0, %v1968
    %1970 = vmatmul.f32.gmra.mxu0 %v1843
    %v1971 = vpop.f32.mrf.mxu0
    %v1972 = vadd.f32 0.0, %v1971
    %1973 = vmatmul.f32.gmra.mxu0 %v1845
    %v1974 = vpop.f32.mrf.mxu0
    %v1975 = vadd.f32 0.0, %v1974
    %1976 = vmatmul.f32.gmra.mxu0 %v1847
    %v1977 = vpop.f32.mrf.mxu0
    %v1978 = vadd.f32 0.0, %v1977
    %1979 = vmatmul.f32.gmra.mxu0 %v1849
    %v1980 = vpop.f32.mrf.mxu0
    %v1981 = vadd.f32 0.0, %v1980
    %1982 = vmatmul.f32.gmra.mxu0 %v1851
    %v1983 = vpop.f32.mrf.mxu0
    %v1984 = vadd.f32 0.0, %v1983
    %1985 = vmatmul.f32.gmra.mxu0 %v1853
    %v1986 = vpop.f32.mrf.mxu0
    %v1987 = vadd.f32 0.0, %v1986
    %1988 = vmatmul.f32.gmra.mxu0 %v1855
    %v1989 = vpop.f32.mrf.mxu0
    %v1990 = vadd.f32 0.0, %v1989
    %1991 = vmatmul.f32.gmra.mxu0 %v1857
    %v1992 = vpop.f32.mrf.mxu0
    %v1993 = vadd.f32 0.0, %v1992
    %1994 = vmatmul.f32.gmra.mxu0 %v1859
    %v1995 = vpop.f32.mrf.mxu0
    %v1996 = vadd.f32 0.0, %v1995
    %1997 = vmatmul.f32.gmra.mxu0 %v1861
    %v1998 = vpop.f32.mrf.mxu0
    %v1999 = vadd.f32 0.0, %v1998
    %2000 = vmatmul.f32.gmra.mxu0 %v1863
    %v2001 = vpop.f32.mrf.mxu0
    %v2002 = vadd.f32 0.0, %v2001
    %2003 = vmatmul.f32.gmra.mxu0 %v1865
    %v2004 = vpop.f32.mrf.mxu0
    %v2005 = vadd.f32 0.0, %v2004
    %2006 = vmatmul.f32.gmra.mxu0 %v1867
    %v2007 = vpop.f32.mrf.mxu0
    %v2008 = vadd.f32 0.0, %v2007
    %2009 = vmatmul.f32.gmra.mxu0 %v1869
    %v2010 = vpop.f32.mrf.mxu0
    %v2011 = vadd.f32 0.0, %v2010
    %2012 = vmatmul.f32.gmra.mxu0 %v1868
    %v2013 = vpop.f32.mrf.mxu0
    %v2014 = vadd.f32 0.0, %v2013
    %2015 = vdwg.mxu0
    %2016 = vmatpush.msra.mxu0 %v1787
    %2017 = vmatpush.msra.mxu0 %v1785
    %2018 = vmatpush.msra.mxu0 %v1783
    %2019 = vmatpush.msra.mxu0 %v1781
    %2020 = vmatpush.msra.mxu0 %v1779
    %2021 = vmatpush.msra.mxu0 %v1777
    %2022 = vmatpush.msra.mxu0 %v1775
    %2023 = vmatpush.msra.mxu0 %v1773
    %2024 = vmatpush.msra.mxu0 %v1771
    %2025 = vmatpush.msra.mxu0 %v1769
    %2026 = vmatpush.msra.mxu0 %v1767
    %2027 = vmatpush.msra.mxu0 %v1765
    %2028 = vmatpush.msra.mxu0 %v1763
    %2029 = vmatpush.msra.mxu0 %v1761
    %2030 = vmatpush.msra.mxu0 %v1759
    %2031 = vmatpush.msra.mxu0 %v1757
    %2032 = vmatmul.f32.gmra.mxu0 %v1741
    %v2033 = vpop.f32.mrf.mxu0
    %v2034 = vadd.f32 %v1904, %v2033
    %2035 = vmatmul.f32.gmra.mxu0 %v1742
    %v2036 = vpop.f32.mrf.mxu0
    %v2037 = vadd.f32 %v1907, %v2036
    %2038 = vmatmul.f32.gmra.mxu0 %v1743
    %v2039 = vpop.f32.mrf.mxu0
    %v2040 = vadd.f32 %v1910, %v2039
    %2041 = vmatmul.f32.gmra.mxu0 %v1744
    %v2042 = vpop.f32.mrf.mxu0
    %v2043 = vadd.f32 %v1913, %v2042
    %2044 = vmatmul.f32.gmra.mxu0 %v1745
    %v2045 = vpop.f32.mrf.mxu0
    %v2046 = vadd.f32 %v1916, %v2045
    %2047 = vmatmul.f32.gmra.mxu0 %v1746
    %v2048 = vpop.f32.mrf.mxu0
    %v2049 = vadd.f32 %v1919, %v2048
    %2050 = vmatmul.f32.gmra.mxu0 %v1747
    %v2051 = vpop.f32.mrf.mxu0
    %v2052 = vadd.f32 %v1922, %v2051
    %2053 = vmatmul.f32.gmra.mxu0 %v1748
    %v2054 = vpop.f32.mrf.mxu0
    %v2055 = vadd.f32 %v1925, %v2054
    %2056 = vmatmul.f32.gmra.mxu0 %v1749
    %v2057 = vpop.f32.mrf.mxu0
    %v2058 = vadd.f32 %v1928, %v2057
    %2059 = vmatmul.f32.gmra.mxu0 %v1750
    %v2060 = vpop.f32.mrf.mxu0
    %v2061 = vadd.f32 %v1931, %v2060
    %2062 = vmatmul.f32.gmra.mxu0 %v1751
    %v2063 = vpop.f32.mrf.mxu0
    %v2064 = vadd.f32 %v1934, %v2063
    %2065 = vmatmul.f32.gmra.mxu0 %v1752
    %v2066 = vpop.f32.mrf.mxu0
    %v2067 = vadd.f32 %v1937, %v2066
    %2068 = vmatmul.f32.gmra.mxu0 %v1753
    %v2069 = vpop.f32.mrf.mxu0
    %v2070 = vadd.f32 %v1940, %v2069
    %2071 = vmatmul.f32.gmra.mxu0 %v1754
    %v2072 = vpop.f32.mrf.mxu0
    %v2073 = vadd.f32 %v1943, %v2072
    %2074 = vmatmul.f32.gmra.mxu0 %v1755
    %v2075 = vpop.f32.mrf.mxu0
    %v2076 = vadd.f32 %v1946, %v2075
    %2077 = vmatmul.f32.gmra.mxu0 %v1756
    %v2078 = vpop.f32.mrf.mxu0
    %v2079 = vadd.f32 %v1949, %v2078
    %2080 = vdwg.mxu0
    %2081 = vmatpush.msra.mxu0 %v1788
    %2082 = vmatpush.msra.mxu0 %v1786
    %2083 = vmatpush.msra.mxu0 %v1784
    %2084 = vmatpush.msra.mxu0 %v1782
    %2085 = vmatpush.msra.mxu0 %v1780
    %2086 = vmatpush.msra.mxu0 %v1778
    %2087 = vmatpush.msra.mxu0 %v1776
    %2088 = vmatpush.msra.mxu0 %v1774
    %2089 = vmatpush.msra.mxu0 %v1772
    %2090 = vmatpush.msra.mxu0 %v1770
    %2091 = vmatpush.msra.mxu0 %v1768
    %2092 = vmatpush.msra.mxu0 %v1766
    %2093 = vmatpush.msra.mxu0 %v1764
    %2094 = vmatpush.msra.mxu0 %v1762
    %2095 = vmatpush.msra.mxu0 %v1760
    %2096 = vmatpush.msra.mxu0 %v1758
    %2097 = vmatmul.f32.gmra.mxu0 %v1741
    %v2098 = vpop.f32.mrf.mxu0
    %v2099 = vadd.f32 %v1969, %v2098
    %2100 = vmatmul.f32.gmra.mxu0 %v1742
    %v2101 = vpop.f32.mrf.mxu0
    %v2102 = vadd.f32 %v1972, %v2101
    %2103 = vmatmul.f32.gmra.mxu0 %v1743
    %v2104 = vpop.f32.mrf.mxu0
    %v2105 = vadd.f32 %v1975, %v2104
    %2106 = vmatmul.f32.gmra.mxu0 %v1744
    %v2107 = vpop.f32.mrf.mxu0
    %v2108 = vadd.f32 %v1978, %v2107
    %2109 = vmatmul.f32.gmra.mxu0 %v1745
    %v2110 = vpop.f32.mrf.mxu0
    %v2111 = vadd.f32 %v1981, %v2110
    %2112 = vmatmul.f32.gmra.mxu0 %v1746
    %v2113 = vpop.f32.mrf.mxu0
    %v2114 = vadd.f32 %v1984, %v2113
    %2115 = vmatmul.f32.gmra.mxu0 %v1747
    %v2116 = vpop.f32.mrf.mxu0
    %v2117 = vadd.f32 %v1987, %v2116
    %2118 = vmatmul.f32.gmra.mxu0 %v1748
    %v2119 = vpop.f32.mrf.mxu0
    %v2120 = vadd.f32 %v1990, %v2119
    %2121 = vmatmul.f32.gmra.mxu0 %v1749
    %v2122 = vpop.f32.mrf.mxu0
    %v2123 = vadd.f32 %v1993, %v2122
    %2124 = vmatmul.f32.gmra.mxu0 %v1750
    %v2125 = vpop.f32.mrf.mxu0
    %v2126 = vadd.f32 %v1996, %v2125
    %2127 = vmatmul.f32.gmra.mxu0 %v1751
    %v2128 = vpop.f32.mrf.mxu0
    %v2129 = vadd.f32 %v1999, %v2128
    %2130 = vmatmul.f32.gmra.mxu0 %v1752
    %v2131 = vpop.f32.mrf.mxu0
    %v2132 = vadd.f32 %v2002, %v2131
    %2133 = vmatmul.f32.gmra.mxu0 %v1753
    %v2134 = vpop.f32.mrf.mxu0
    %v2135 = vadd.f32 %v2005, %v2134
    %2136 = vmatmul.f32.gmra.mxu0 %v1754
    %v2137 = vpop.f32.mrf.mxu0
    %v2138 = vadd.f32 %v2008, %v2137
    %2139 = vmatmul.f32.gmra.mxu0 %v1755
    %v2140 = vpop.f32.mrf.mxu0
    %v2141 = vadd.f32 %v2011, %v2140
    %2142 = vmatmul.f32.gmra.mxu0 %v1756
    %v2143 = vpop.f32.mrf.mxu0
    %v2144 = vadd.f32 %v2014, %v2143
    %2145 = vdwg.mxu0
    %s2146 = scalar_lea.vmem [#allocation4], 512
    %v2147 = vld [vmem:[%s2146] sm:$0xff]
    %v2148 = vld [vmem:[%s2146 + $0x8] sm:$0xff]
    %v2149 = vld [vmem:[%s2146 + $0x10] sm:$0xff]
    %v2150 = vld [vmem:[%s2146 + $0x18] sm:$0xff]
    %v2151 = vld [vmem:[%s2146 + $0x20] sm:$0xff]
    %v2152 = vld [vmem:[%s2146 + $0x28] sm:$0xff]
    %v2153 = vld [vmem:[%s2146 + $0x30] sm:$0xff]
    %v2154 = vld [vmem:[%s2146 + $0x38] sm:$0xff]
    %v2155 = vld [vmem:[%s2146 + $0x40] sm:$0xff]
    %v2156 = vld [vmem:[%s2146 + $0x48] sm:$0xff]
    %v2157 = vld [vmem:[%s2146 + $0x50] sm:$0xff]
    %v2158 = vld [vmem:[%s2146 + $0x58] sm:$0xff]
    %v2159 = vld [vmem:[%s2146 + $0x60] sm:$0xff]
    %v2160 = vld [vmem:[%s2146 + $0x68] sm:$0xff]
    %v2161 = vld [vmem:[%s2146 + $0x70] sm:$0xff]
    %v2162 = vld [vmem:[%s2146 + $0x78] sm:$0xff]
    %v2163 = vld [vmem:[%s2146 + $0x80] sm:$0xff]
    %v2164 = vld [vmem:[%s2146 + $0x88] sm:$0xff]
    %v2165 = vld [vmem:[%s2146 + $0x90] sm:$0xff]
    %v2166 = vld [vmem:[%s2146 + $0x98] sm:$0xff]
    %v2167 = vld [vmem:[%s2146 + $0xa0] sm:$0xff]
    %v2168 = vld [vmem:[%s2146 + $0xa8] sm:$0xff]
    %v2169 = vld [vmem:[%s2146 + $0xb0] sm:$0xff]
    %v2170 = vld [vmem:[%s2146 + $0xb8] sm:$0xff]
    %v2171 = vld [vmem:[%s2146 + $0xc0] sm:$0xff]
    %v2172 = vld [vmem:[%s2146 + $0xc8] sm:$0xff]
    %v2173 = vld [vmem:[%s2146 + $0xd0] sm:$0xff]
    %v2174 = vld [vmem:[%s2146 + $0xd8] sm:$0xff]
    %v2175 = vld [vmem:[%s2146 + $0xe0] sm:$0xff]
    %v2176 = vld [vmem:[%s2146 + $0xe8] sm:$0xff]
    %v2177 = vld [vmem:[%s2146 + $0xf0] sm:$0xff]
    %v2178 = vld [vmem:[%s2146 + $0xf8] sm:$0xff]
    %v2179 = vrot.slane %v1741, 2
    %v2180 = vrot.slane %v1742, 2
    %v2181 = vsel %vm273, %v2179, %v2180
    %v2182 = vrot.slane %v1743, 2
    %v2183 = vsel %vm273, %v2180, %v2182
    %v2184 = vrot.slane %v1744, 2
    %v2185 = vsel %vm273, %v2182, %v2184
    %v2186 = vrot.slane %v1745, 2
    %v2187 = vsel %vm273, %v2184, %v2186
    %v2188 = vrot.slane %v1746, 2
    %v2189 = vsel %vm273, %v2186, %v2188
    %v2190 = vrot.slane %v1747, 2
    %v2191 = vsel %vm273, %v2188, %v2190
    %v2192 = vrot.slane %v1748, 2
    %v2193 = vsel %vm273, %v2190, %v2192
    %v2194 = vrot.slane %v1749, 2
    %v2195 = vsel %vm273, %v2192, %v2194
    %v2196 = vrot.slane %v1750, 2
    %v2197 = vsel %vm273, %v2194, %v2196
    %v2198 = vrot.slane %v1751, 2
    %v2199 = vsel %vm273, %v2196, %v2198
    %v2200 = vrot.slane %v1752, 2
    %v2201 = vsel %vm273, %v2198, %v2200
    %v2202 = vrot.slane %v1753, 2
    %v2203 = vsel %vm273, %v2200, %v2202
    %v2204 = vrot.slane %v1754, 2
    %v2205 = vsel %vm273, %v2202, %v2204
    %v2206 = vrot.slane %v1755, 2
    %v2207 = vsel %vm273, %v2204, %v2206
    %v2208 = vrot.slane %v1756, 2
    %v2209 = vsel %vm273, %v2206, %v2208
    %2226 = vmatpush.msra.mxu0 %v2177
    %2227 = vmatpush.msra.mxu0 %v2175
    %2228 = vmatpush.msra.mxu0 %v2173
    %2229 = vmatpush.msra.mxu0 %v2171
    %2230 = vmatpush.msra.mxu0 %v2169
    %2231 = vmatpush.msra.mxu0 %v2167
    %2232 = vmatpush.msra.mxu0 %v2165
    %2233 = vmatpush.msra.mxu0 %v2163
    %2234 = vmatpush.msra.mxu0 %v2161
    %2235 = vmatpush.msra.mxu0 %v2159
    %2236 = vmatpush.msra.mxu0 %v2157
    %2237 = vmatpush.msra.mxu0 %v2155
    %2238 = vmatpush.msra.mxu0 %v2153
    %2239 = vmatpush.msra.mxu0 %v2151
    %2240 = vmatpush.msra.mxu0 %v2149
    %2241 = vmatpush.msra.mxu0 %v2147
    %2242 = vmatmul.f32.gmra.mxu0 %v2181
    %v2243 = vpop.f32.mrf.mxu0
    %v2244 = vadd.f32 0.0, %v2243
    %2245 = vmatmul.f32.gmra.mxu0 %v2183
    %v2246 = vpop.f32.mrf.mxu0
    %v2247 = vadd.f32 0.0, %v2246
    %2248 = vmatmul.f32.gmra.mxu0 %v2185
    %v2249 = vpop.f32.mrf.mxu0
    %v2250 = vadd.f32 0.0, %v2249
    %2251 = vmatmul.f32.gmra.mxu0 %v2187
    %v2252 = vpop.f32.mrf.mxu0
    %v2253 = vadd.f32 0.0, %v2252
    %2254 = vmatmul.f32.gmra.mxu0 %v2189
    %v2255 = vpop.f32.mrf.mxu0
    %v2256 = vadd.f32 0.0, %v2255
    %2257 = vmatmul.f32.gmra.mxu0 %v2191
    %v2258 = vpop.f32.mrf.mxu0
    %v2259 = vadd.f32 0.0, %v2258
    %2260 = vmatmul.f32.gmra.mxu0 %v2193
    %v2261 = vpop.f32.mrf.mxu0
    %v2262 = vadd.f32 0.0, %v2261
    %2263 = vmatmul.f32.gmra.mxu0 %v2195
    %v2264 = vpop.f32.mrf.mxu0
    %v2265 = vadd.f32 0.0, %v2264
    %2266 = vmatmul.f32.gmra.mxu0 %v2197
    %v2267 = vpop.f32.mrf.mxu0
    %v2268 = vadd.f32 0.0, %v2267
    %2269 = vmatmul.f32.gmra.mxu0 %v2199
    %v2270 = vpop.f32.mrf.mxu0
    %v2271 = vadd.f32 0.0, %v2270
    %2272 = vmatmul.f32.gmra.mxu0 %v2201
    %v2273 = vpop.f32.mrf.mxu0
    %v2274 = vadd.f32 0.0, %v2273
    %2275 = vmatmul.f32.gmra.mxu0 %v2203
    %v2276 = vpop.f32.mrf.mxu0
    %v2277 = vadd.f32 0.0, %v2276
    %2278 = vmatmul.f32.gmra.mxu0 %v2205
    %v2279 = vpop.f32.mrf.mxu0
    %v2280 = vadd.f32 0.0, %v2279
    %2281 = vmatmul.f32.gmra.mxu0 %v2207
    %v2282 = vpop.f32.mrf.mxu0
    %v2283 = vadd.f32 0.0, %v2282
    %2284 = vmatmul.f32.gmra.mxu0 %v2209
    %v2285 = vpop.f32.mrf.mxu0
    %v2286 = vadd.f32 0.0, %v2285
    %2287 = vmatmul.f32.gmra.mxu0 %v2208
    %v2288 = vpop.f32.mrf.mxu0
    %v2289 = vadd.f32 0.0, %v2288
    %2290 = vdwg.mxu0
    %2291 = vmatpush.msra.mxu0 %v2178
    %2292 = vmatpush.msra.mxu0 %v2176
    %2293 = vmatpush.msra.mxu0 %v2174
    %2294 = vmatpush.msra.mxu0 %v2172
    %2295 = vmatpush.msra.mxu0 %v2170
    %2296 = vmatpush.msra.mxu0 %v2168
    %2297 = vmatpush.msra.mxu0 %v2166
    %2298 = vmatpush.msra.mxu0 %v2164
    %2299 = vmatpush.msra.mxu0 %v2162
    %2300 = vmatpush.msra.mxu0 %v2160
    %2301 = vmatpush.msra.mxu0 %v2158
    %2302 = vmatpush.msra.mxu0 %v2156
    %2303 = vmatpush.msra.mxu0 %v2154
    %2304 = vmatpush.msra.mxu0 %v2152
    %2305 = vmatpush.msra.mxu0 %v2150
    %2306 = vmatpush.msra.mxu0 %v2148
    %2307 = vmatmul.f32.gmra.mxu0 %v2181
    %v2308 = vpop.f32.mrf.mxu0
    %v2309 = vadd.f32 0.0, %v2308
    %2310 = vmatmul.f32.gmra.mxu0 %v2183
    %v2311 = vpop.f32.mrf.mxu0
    %v2312 = vadd.f32 0.0, %v2311
    %2313 = vmatmul.f32.gmra.mxu0 %v2185
    %v2314 = vpop.f32.mrf.mxu0
    %v2315 = vadd.f32 0.0, %v2314
    %2316 = vmatmul.f32.gmra.mxu0 %v2187
    %v2317 = vpop.f32.mrf.mxu0
    %v2318 = vadd.f32 0.0, %v2317
    %2319 = vmatmul.f32.gmra.mxu0 %v2189
    %v2320 = vpop.f32.mrf.mxu0
    %v2321 = vadd.f32 0.0, %v2320
    %2322 = vmatmul.f32.gmra.mxu0 %v2191
    %v2323 = vpop.f32.mrf.mxu0
    %v2324 = vadd.f32 0.0, %v2323
    %2325 = vmatmul.f32.gmra.mxu0 %v2193
    %v2326 = vpop.f32.mrf.mxu0
    %v2327 = vadd.f32 0.0, %v2326
    %2328 = vmatmul.f32.gmra.mxu0 %v2195
    %v2329 = vpop.f32.mrf.mxu0
    %v2330 = vadd.f32 0.0, %v2329
    %2331 = vmatmul.f32.gmra.mxu0 %v2197
    %v2332 = vpop.f32.mrf.mxu0
    %v2333 = vadd.f32 0.0, %v2332
    %2334 = vmatmul.f32.gmra.mxu0 %v2199
    %v2335 = vpop.f32.mrf.mxu0
    %v2336 = vadd.f32 0.0, %v2335
    %2337 = vmatmul.f32.gmra.mxu0 %v2201
    %v2338 = vpop.f32.mrf.mxu0
    %v2339 = vadd.f32 0.0, %v2338
    %2340 = vmatmul.f32.gmra.mxu0 %v2203
    %v2341 = vpop.f32.mrf.mxu0
    %v2342 = vadd.f32 0.0, %v2341
    %2343 = vmatmul.f32.gmra.mxu0 %v2205
    %v2344 = vpop.f32.mrf.mxu0
    %v2345 = vadd.f32 0.0, %v2344
    %2346 = vmatmul.f32.gmra.mxu0 %v2207
    %v2347 = vpop.f32.mrf.mxu0
    %v2348 = vadd.f32 0.0, %v2347
    %2349 = vmatmul.f32.gmra.mxu0 %v2209
    %v2350 = vpop.f32.mrf.mxu0
    %v2351 = vadd.f32 0.0, %v2350
    %2352 = vmatmul.f32.gmra.mxu0 %v2208
    %v2353 = vpop.f32.mrf.mxu0
    %v2354 = vadd.f32 0.0, %v2353
    %2355 = vdwg.mxu0
    %v2356 = vadd.f32 %v2034, %v2244
    %v2357 = vadd.f32 %v2099, %v2309
    %v2358 = vadd.f32 %v2037, %v2247
    %v2359 = vadd.f32 %v2102, %v2312
    %v2360 = vadd.f32 %v2040, %v2250
    %v2361 = vadd.f32 %v2105, %v2315
    %v2362 = vadd.f32 %v2043, %v2253
    %v2363 = vadd.f32 %v2108, %v2318
    %v2364 = vadd.f32 %v2046, %v2256
    %v2365 = vadd.f32 %v2111, %v2321
    %v2366 = vadd.f32 %v2049, %v2259
    %v2367 = vadd.f32 %v2114, %v2324
    %v2368 = vadd.f32 %v2052, %v2262
    %v2369 = vadd.f32 %v2117, %v2327
    %v2370 = vadd.f32 %v2055, %v2265
    %v2371 = vadd.f32 %v2120, %v2330
    %v2372 = vadd.f32 %v2058, %v2268
    %v2373 = vadd.f32 %v2123, %v2333
    %v2374 = vadd.f32 %v2061, %v2271
    %v2375 = vadd.f32 %v2126, %v2336
    %v2376 = vadd.f32 %v2064, %v2274
    %v2377 = vadd.f32 %v2129, %v2339
    %v2378 = vadd.f32 %v2067, %v2277
    %v2379 = vadd.f32 %v2132, %v2342
    %v2380 = vadd.f32 %v2070, %v2280
    %v2381 = vadd.f32 %v2135, %v2345
    %v2382 = vadd.f32 %v2073, %v2283
    %v2383 = vadd.f32 %v2138, %v2348
    %v2384 = vadd.f32 %v2076, %v2286
    %v2385 = vadd.f32 %v2141, %v2351
    %v2386 = vadd.f32 %v2079, %v2289
    %v2387 = vadd.f32 %v2144, %v2354
    %v2388 = vmax.f32 %v2356, %v2357
    %v2389 = vmax.f32 %v2358, %v2359
    %v2390 = vmax.f32 %v2360, %v2361
    %v2391 = vmax.f32 %v2362, %v2363
    %v2392 = vmax.f32 %v2364, %v2365
    %v2393 = vmax.f32 %v2366, %v2367
    %v2394 = vmax.f32 %v2368, %v2369
    %v2395 = vmax.f32 %v2370, %v2371
    %v2396 = vmax.f32 %v2372, %v2373
    %v2397 = vmax.f32 %v2374, %v2375
    %v2398 = vmax.f32 %v2376, %v2377
    %v2399 = vmax.f32 %v2378, %v2379
    %v2400 = vmax.f32 %v2380, %v2381
    %v2401 = vmax.f32 %v2382, %v2383
    %v2402 = vmax.f32 %v2384, %v2385
    %v2403 = vmax.f32 %v2386, %v2387
    %v2404 = vld [vmem:[%s5] sm:$0x1]
    %v2406 = vperm.slane %v2404, 0
    %v2408 = vadd.f32 %v2388, %v2406
    %v2409 = vadd.f32 %v2389, %v2406
    %v2410 = vadd.f32 %v2390, %v2406
    %v2411 = vadd.f32 %v2391, %v2406
    %v2412 = vadd.f32 %v2392, %v2406
    %v2413 = vadd.f32 %v2393, %v2406
    %v2414 = vadd.f32 %v2394, %v2406
    %v2415 = vadd.f32 %v2395, %v2406
    %v2416 = vadd.f32 %v2396, %v2406
    %v2417 = vadd.f32 %v2397, %v2406
    %v2418 = vadd.f32 %v2398, %v2406
    %v2419 = vadd.f32 %v2399, %v2406
    %v2420 = vadd.f32 %v2400, %v2406
    %v2421 = vadd.f32 %v2401, %v2406
    %v2422 = vadd.f32 %v2402, %v2406
    %v2423 = vadd.f32 %v2403, %v2406
    %v2424 = vld [vmem:[#allocation6] sm:$0xff]
    %v2425 = vld [vmem:[#allocation6 + $0x8] sm:$0xff]
    %v2426 = vld [vmem:[#allocation6 + $0x10] sm:$0xff]
    %v2427 = vld [vmem:[#allocation6 + $0x18] sm:$0xff]
    %v2428 = vld [vmem:[#allocation6 + $0x20] sm:$0xff]
    %v2429 = vld [vmem:[#allocation6 + $0x28] sm:$0xff]
    %v2430 = vld [vmem:[#allocation6 + $0x30] sm:$0xff]
    %v2431 = vld [vmem:[#allocation6 + $0x38] sm:$0xff]
    %v2432 = vld [vmem:[#allocation6 + $0x40] sm:$0xff]
    %v2433 = vld [vmem:[#allocation6 + $0x48] sm:$0xff]
    %v2434 = vld [vmem:[#allocation6 + $0x50] sm:$0xff]
    %v2435 = vld [vmem:[#allocation6 + $0x58] sm:$0xff]
    %v2436 = vld [vmem:[#allocation6 + $0x60] sm:$0xff]
    %v2437 = vld [vmem:[#allocation6 + $0x68] sm:$0xff]
    %v2439 = vsel %vm1399, %v2424, 0
    %v2442 = vsel %vm1399, %v2425, 0
    %v2445 = vsel %vm1399, %v2426, 0
    %v2448 = vsel %vm1399, %v2427, 0
    %v2451 = vsel %vm1399, %v2428, 0
    %v2454 = vsel %vm1399, %v2429, 0
    %v2457 = vsel %vm1399, %v2430, 0
    %v2460 = vsel %vm1399, %v2431, 0
    %v2463 = vsel %vm1399, %v2432, 0
    %v2466 = vsel %vm1399, %v2433, 0
    %v2469 = vsel %vm1399, %v2434, 0
    %v2472 = vsel %vm1399, %v2435, 0
    %v2475 = vsel %vm1399, %v2436, 0
    %v2478 = vsel %vm1399, %v2437, 0
    %v2481 = vsel %vm273, %v2423, 0
    %2483 = vmatpush.msra.mxu0 %v2481
    %2484 = vmatpush.msra.mxu0 %v2422
    %2485 = vmatpush.msra.mxu0 %v2421
    %2486 = vmatpush.msra.mxu0 %v2420
    %2487 = vmatpush.msra.mxu0 %v2419
    %2488 = vmatpush.msra.mxu0 %v2418
    %2489 = vmatpush.msra.mxu0 %v2417
    %2490 = vmatpush.msra.mxu0 %v2416
    %2491 = vmatpush.msra.mxu0 %v2415
    %2492 = vmatpush.msra.mxu0 %v2414
    %2493 = vmatpush.msra.mxu0 %v2413
    %2494 = vmatpush.msra.mxu0 %v2412
    %2495 = vmatpush.msra.mxu0 %v2411
    %2496 = vmatpush.msra.mxu0 %v2410
    %2497 = vmatpush.msra.mxu0 %v2409
    %2498 = vmatpush.msra.mxu0 %v2408
    %2499 = vmatmul.f32.gmra.mxu0 %v2439
    %v2500 = vpop.f32.mrf.mxu0
    %v2501 = vadd.f32 0.0, %v2500
    %2502 = vmatmul.f32.gmra.mxu0 %v2442
    %v2503 = vpop.f32.mrf.mxu0
    %v2504 = vadd.f32 0.0, %v2503
    %2505 = vmatmul.f32.gmra.mxu0 %v2445
    %v2506 = vpop.f32.mrf.mxu0
    %v2507 = vadd.f32 0.0, %v2506
    %2508 = vmatmul.f32.gmra.mxu0 %v2448
    %v2509 = vpop.f32.mrf.mxu0
    %v2510 = vadd.f32 0.0, %v2509
    %2511 = vmatmul.f32.gmra.mxu0 %v2451
    %v2512 = vpop.f32.mrf.mxu0
    %v2513 = vadd.f32 0.0, %v2512
    %2514 = vmatmul.f32.gmra.mxu0 %v2454
    %v2515 = vpop.f32.mrf.mxu0
    %v2516 = vadd.f32 0.0, %v2515
    %2517 = vmatmul.f32.gmra.mxu0 %v2457
    %v2518 = vpop.f32.mrf.mxu0
    %v2519 = vadd.f32 0.0, %v2518
    %2520 = vmatmul.f32.gmra.mxu0 %v2460
    %v2521 = vpop.f32.mrf.mxu0
    %v2522 = vadd.f32 0.0, %v2521
    %2523 = vmatmul.f32.gmra.mxu0 %v2463
    %v2524 = vpop.f32.mrf.mxu0
    %v2525 = vadd.f32 0.0, %v2524
    %2526 = vmatmul.f32.gmra.mxu0 %v2466
    %v2527 = vpop.f32.mrf.mxu0
    %v2528 = vadd.f32 0.0, %v2527
    %2529 = vmatmul.f32.gmra.mxu0 %v2469
    %v2530 = vpop.f32.mrf.mxu0
    %v2531 = vadd.f32 0.0, %v2530
    %2532 = vmatmul.f32.gmra.mxu0 %v2472
    %v2533 = vpop.f32.mrf.mxu0
    %v2534 = vadd.f32 0.0, %v2533
    %2535 = vmatmul.f32.gmra.mxu0 %v2475
    %v2536 = vpop.f32.mrf.mxu0
    %v2537 = vadd.f32 0.0, %v2536
    %2538 = vmatmul.f32.gmra.mxu0 %v2478
    %v2539 = vpop.f32.mrf.mxu0
    %v2540 = vadd.f32 0.0, %v2539
    %2541 = vdwg.mxu0
    %v2542 = vmax.f32 %v2501, %v2522
    %v2543 = vmax.f32 %v2504, %v2525
    %v2544 = vmax.f32 %v2507, %v2528
    %v2545 = vmax.f32 %v2510, %v2531
    %v2546 = vmax.f32 %v2513, %v2534
    %v2547 = vmax.f32 %v2516, %v2537
    %v2548 = vmax.f32 %v2519, %v2540
    %v2549 = vmax.f32 %v2542, 0.0
    %v2550 = vmax.f32 %v2543, 0.0
    %v2551 = vmax.f32 %v2544, 0.0
    %v2552 = vmax.f32 %v2545, 0.0
    %v2553 = vmax.f32 %v2546, 0.0
    %v2554 = vmax.f32 %v2547, 0.0
    %v2555 = vmax.f32 %v2548, 0.0
    %v2556 = vld [vmem:[#allocation7] sm:$0xff]
    %v2557 = vld [vmem:[#allocation7 + $0x8] sm:$0xff]
    %v2558 = vld [vmem:[#allocation7 + $0x10] sm:$0xff]
    %v2559 = vld [vmem:[#allocation7 + $0x18] sm:$0xff]
    %v2560 = vld [vmem:[#allocation7 + $0x20] sm:$0xff]
    %v2561 = vld [vmem:[#allocation7 + $0x28] sm:$0xff]
    %v2562 = vld [vmem:[#allocation7 + $0x30] sm:$0xff]
    %v2563 = vld [vmem:[#allocation7 + $0x38] sm:$0xff]
    %v2564 = vld [vmem:[#allocation7 + $0x40] sm:$0xff]
    %v2565 = vld [vmem:[#allocation7 + $0x48] sm:$0xff]
    %v2566 = vld [vmem:[#allocation7 + $0x50] sm:$0xff]
    %v2567 = vld [vmem:[#allocation7 + $0x58] sm:$0xff]
    %v2568 = vld [vmem:[#allocation7 + $0x60] sm:$0xff]
    %v2569 = vld [vmem:[#allocation7 + $0x68] sm:$0xff]
    %v2570 = vld [vmem:[#allocation7 + $0x70] sm:$0xff]
    %v2571 = vld [vmem:[#allocation7 + $0x78] sm:$0xff]
    %s2572 = scalar_lea.vmem [#allocation7], 128
    %v2573 = vld [vmem:[%s2572] sm:$0xff]
    %v2574 = vld [vmem:[%s2572 + $0x8] sm:$0xff]
    %v2575 = vld [vmem:[%s2572 + $0x10] sm:$0xff]
    %v2576 = vld [vmem:[%s2572 + $0x18] sm:$0xff]
    %v2577 = vld [vmem:[%s2572 + $0x20] sm:$0xff]
    %v2578 = vld [vmem:[%s2572 + $0x28] sm:$0xff]
    %v2579 = vld [vmem:[%s2572 + $0x30] sm:$0xff]
    %v2580 = vld [vmem:[%s2572 + $0x38] sm:$0xff]
    %v2581 = vld [vmem:[%s2572 + $0x40] sm:$0xff]
    %v2582 = vld [vmem:[%s2572 + $0x48] sm:$0xff]
    %v2583 = vld [vmem:[%s2572 + $0x50] sm:$0xff]
    %v2584 = vld [vmem:[%s2572 + $0x58] sm:$0xff]
    %v2585 = vld [vmem:[%s2572 + $0x60] sm:$0xff]
    %v2586 = vld [vmem:[%s2572 + $0x68] sm:$0xff]
    %v2587 = vld [vmem:[%s2572 + $0x70] sm:$0xff]
    %v2588 = vld [vmem:[%s2572 + $0x78] sm:$0xff]
    %2589 = vmatpush.msra.mxu0 %v2588
    %2590 = vmatpush.msra.mxu0 %v2587
    %2591 = vmatpush.msra.mxu0 %v2586
    %2592 = vmatpush.msra.mxu0 %v2585
    %2593 = vmatpush.msra.mxu0 %v2584
    %2594 = vmatpush.msra.mxu0 %v2583
    %2595 = vmatpush.msra.mxu0 %v2582
    %2596 = vmatpush.msra.mxu0 %v2581
    %2597 = vmatpush.msra.mxu0 %v2580
    %2598 = vmatpush.msra.mxu0 %v2579
    %2599 = vmatpush.msra.mxu0 %v2578
    %2600 = vmatpush.msra.mxu0 %v2577
    %2601 = vmatpush.msra.mxu0 %v2576
    %2602 = vmatpush.msra.mxu0 %v2575
    %2603 = vmatpush.msra.mxu0 %v2574
    %2604 = vmatpush.msra.mxu0 %v2573
    %2605 = vmatmul.f32.gmra.mxu0 %v2550
    %v2606 = vpop.f32.mrf.mxu0
    %v2607 = vadd.f32 0.0, %v2606
    %2608 = vdwg.mxu0
    %2609 = vmatpush.msra.mxu0 %v2571
    %2610 = vmatpush.msra.mxu0 %v2570
    %2611 = vmatpush.msra.mxu0 %v2569
    %2612 = vmatpush.msra.mxu0 %v2568
    %2613 = vmatpush.msra.mxu0 %v2567
    %2614 = vmatpush.msra.mxu0 %v2566
    %2615 = vmatpush.msra.mxu0 %v2565
    %2616 = vmatpush.msra.mxu0 %v2564
    %2617 = vmatpush.msra.mxu0 %v2563
    %2618 = vmatpush.msra.mxu0 %v2562
    %2619 = vmatpush.msra.mxu0 %v2561
    %2620 = vmatpush.msra.mxu0 %v2560
    %2621 = vmatpush.msra.mxu0 %v2559
    %2622 = vmatpush.msra.mxu0 %v2558
    %2623 = vmatpush.msra.mxu0 %v2557
    %2624 = vmatpush.msra.mxu0 %v2556
    %2625 = vmatmul.f32.gmra.mxu0 %v2549
    %v2626 = vpop.f32.mrf.mxu0
    %v2627 = vadd.f32 %v2607, %v2626
    %2628 = vdwg.mxu0
    %s2629 = scalar_lea.vmem [#allocation7], 256
    %v2630 = vld [vmem:[%s2629] sm:$0xff]
    %v2631 = vld [vmem:[%s2629 + $0x8] sm:$0xff]
    %v2632 = vld [vmem:[%s2629 + $0x10] sm:$0xff]
    %v2633 = vld [vmem:[%s2629 + $0x18] sm:$0xff]
    %v2634 = vld [vmem:[%s2629 + $0x20] sm:$0xff]
    %v2635 = vld [vmem:[%s2629 + $0x28] sm:$0xff]
    %v2636 = vld [vmem:[%s2629 + $0x30] sm:$0xff]
    %v2637 = vld [vmem:[%s2629 + $0x38] sm:$0xff]
    %v2638 = vld [vmem:[%s2629 + $0x40] sm:$0xff]
    %v2639 = vld [vmem:[%s2629 + $0x48] sm:$0xff]
    %v2640 = vld [vmem:[%s2629 + $0x50] sm:$0xff]
    %v2641 = vld [vmem:[%s2629 + $0x58] sm:$0xff]
    %v2642 = vld [vmem:[%s2629 + $0x60] sm:$0xff]
    %v2643 = vld [vmem:[%s2629 + $0x68] sm:$0xff]
    %v2644 = vld [vmem:[%s2629 + $0x70] sm:$0xff]
    %v2645 = vld [vmem:[%s2629 + $0x78] sm:$0xff]
    %2646 = vmatpush.msra.mxu0 %v2645
    %2647 = vmatpush.msra.mxu0 %v2644
    %2648 = vmatpush.msra.mxu0 %v2643
    %2649 = vmatpush.msra.mxu0 %v2642
    %2650 = vmatpush.msra.mxu0 %v2641
    %2651 = vmatpush.msra.mxu0 %v2640
    %2652 = vmatpush.msra.mxu0 %v2639
    %2653 = vmatpush.msra.mxu0 %v2638
    %2654 = vmatpush.msra.mxu0 %v2637
    %2655 = vmatpush.msra.mxu0 %v2636
    %2656 = vmatpush.msra.mxu0 %v2635
    %2657 = vmatpush.msra.mxu0 %v2634
    %2658 = vmatpush.msra.mxu0 %v2633
    %2659 = vmatpush.msra.mxu0 %v2632
    %2660 = vmatpush.msra.mxu0 %v2631
    %2661 = vmatpush.msra.mxu0 %v2630
    %2662 = vmatmul.f32.gmra.mxu0 %v2551
    %v2663 = vpop.f32.mrf.mxu0
    %v2664 = vadd.f32 0.0, %v2663
    %2665 = vdwg.mxu0
    %v2666 = vadd.f32 %v2627, %v2664
    %s2667 = scalar_lea.vmem [#allocation7], 384
    %v2668 = vld [vmem:[%s2667] sm:$0xff]
    %v2669 = vld [vmem:[%s2667 + $0x8] sm:$0xff]
    %v2670 = vld [vmem:[%s2667 + $0x10] sm:$0xff]
    %v2671 = vld [vmem:[%s2667 + $0x18] sm:$0xff]
    %v2672 = vld [vmem:[%s2667 + $0x20] sm:$0xff]
    %v2673 = vld [vmem:[%s2667 + $0x28] sm:$0xff]
    %v2674 = vld [vmem:[%s2667 + $0x30] sm:$0xff]
    %v2675 = vld [vmem:[%s2667 + $0x38] sm:$0xff]
    %v2676 = vld [vmem:[%s2667 + $0x40] sm:$0xff]
    %v2677 = vld [vmem:[%s2667 + $0x48] sm:$0xff]
    %v2678 = vld [vmem:[%s2667 + $0x50] sm:$0xff]
    %v2679 = vld [vmem:[%s2667 + $0x58] sm:$0xff]
    %v2680 = vld [vmem:[%s2667 + $0x60] sm:$0xff]
    %v2681 = vld [vmem:[%s2667 + $0x68] sm:$0xff]
    %v2682 = vld [vmem:[%s2667 + $0x70] sm:$0xff]
    %v2683 = vld [vmem:[%s2667 + $0x78] sm:$0xff]
    %2684 = vmatpush.msra.mxu0 %v2683
    %2685 = vmatpush.msra.mxu0 %v2682
    %2686 = vmatpush.msra.mxu0 %v2681
    %2687 = vmatpush.msra.mxu0 %v2680
    %2688 = vmatpush.msra.mxu0 %v2679
    %2689 = vmatpush.msra.mxu0 %v2678
    %2690 = vmatpush.msra.mxu0 %v2677
    %2691 = vmatpush.msra.mxu0 %v2676
    %2692 = vmatpush.msra.mxu0 %v2675
    %2693 = vmatpush.msra.mxu0 %v2674
    %2694 = vmatpush.msra.mxu0 %v2673
    %2695 = vmatpush.msra.mxu0 %v2672
    %2696 = vmatpush.msra.mxu0 %v2671
    %2697 = vmatpush.msra.mxu0 %v2670
    %2698 = vmatpush.msra.mxu0 %v2669
    %2699 = vmatpush.msra.mxu0 %v2668
    %2700 = vmatmul.f32.gmra.mxu0 %v2552
    %v2701 = vpop.f32.mrf.mxu0
    %v2702 = vadd.f32 0.0, %v2701
    %2703 = vdwg.mxu0
    %v2704 = vadd.f32 %v2666, %v2702
    %s2705 = scalar_lea.vmem [#allocation7], 512
    %v2706 = vld [vmem:[%s2705] sm:$0xff]
    %v2707 = vld [vmem:[%s2705 + $0x8] sm:$0xff]
    %v2708 = vld [vmem:[%s2705 + $0x10] sm:$0xff]
    %v2709 = vld [vmem:[%s2705 + $0x18] sm:$0xff]
    %v2710 = vld [vmem:[%s2705 + $0x20] sm:$0xff]
    %v2711 = vld [vmem:[%s2705 + $0x28] sm:$0xff]
    %v2712 = vld [vmem:[%s2705 + $0x30] sm:$0xff]
    %v2713 = vld [vmem:[%s2705 + $0x38] sm:$0xff]
    %v2714 = vld [vmem:[%s2705 + $0x40] sm:$0xff]
    %v2715 = vld [vmem:[%s2705 + $0x48] sm:$0xff]
    %v2716 = vld [vmem:[%s2705 + $0x50] sm:$0xff]
    %v2717 = vld [vmem:[%s2705 + $0x58] sm:$0xff]
    %v2718 = vld [vmem:[%s2705 + $0x60] sm:$0xff]
    %v2719 = vld [vmem:[%s2705 + $0x68] sm:$0xff]
    %v2720 = vld [vmem:[%s2705 + $0x70] sm:$0xff]
    %v2721 = vld [vmem:[%s2705 + $0x78] sm:$0xff]
    %2722 = vmatpush.msra.mxu0 %v2721
    %2723 = vmatpush.msra.mxu0 %v2720
    %2724 = vmatpush.msra.mxu0 %v2719
    %2725 = vmatpush.msra.mxu0 %v2718
    %2726 = vmatpush.msra.mxu0 %v2717
    %2727 = vmatpush.msra.mxu0 %v2716
    %2728 = vmatpush.msra.mxu0 %v2715
    %2729 = vmatpush.msra.mxu0 %v2714
    %2730 = vmatpush.msra.mxu0 %v2713
    %2731 = vmatpush.msra.mxu0 %v2712
    %2732 = vmatpush.msra.mxu0 %v2711
    %2733 = vmatpush.msra.mxu0 %v2710
    %2734 = vmatpush.msra.mxu0 %v2709
    %2735 = vmatpush.msra.mxu0 %v2708
    %2736 = vmatpush.msra.mxu0 %v2707
    %2737 = vmatpush.msra.mxu0 %v2706
    %2738 = vmatmul.f32.gmra.mxu0 %v2553
    %v2739 = vpop.f32.mrf.mxu0
    %v2740 = vadd.f32 0.0, %v2739
    %2741 = vdwg.mxu0
    %v2742 = vadd.f32 %v2704, %v2740
    %s2743 = scalar_lea.vmem [#allocation7], 640
    %v2744 = vld [vmem:[%s2743] sm:$0xff]
    %v2745 = vld [vmem:[%s2743 + $0x8] sm:$0xff]
    %v2746 = vld [vmem:[%s2743 + $0x10] sm:$0xff]
    %v2747 = vld [vmem:[%s2743 + $0x18] sm:$0xff]
    %v2748 = vld [vmem:[%s2743 + $0x20] sm:$0xff]
    %v2749 = vld [vmem:[%s2743 + $0x28] sm:$0xff]
    %v2750 = vld [vmem:[%s2743 + $0x30] sm:$0xff]
    %v2751 = vld [vmem:[%s2743 + $0x38] sm:$0xff]
    %v2752 = vld [vmem:[%s2743 + $0x40] sm:$0xff]
    %v2753 = vld [vmem:[%s2743 + $0x48] sm:$0xff]
    %v2754 = vld [vmem:[%s2743 + $0x50] sm:$0xff]
    %v2755 = vld [vmem:[%s2743 + $0x58] sm:$0xff]
    %v2756 = vld [vmem:[%s2743 + $0x60] sm:$0xff]
    %v2757 = vld [vmem:[%s2743 + $0x68] sm:$0xff]
    %v2758 = vld [vmem:[%s2743 + $0x70] sm:$0xff]
    %v2759 = vld [vmem:[%s2743 + $0x78] sm:$0xff]
    %2760 = vmatpush.msra.mxu0 %v2759
    %2761 = vmatpush.msra.mxu0 %v2758
    %2762 = vmatpush.msra.mxu0 %v2757
    %2763 = vmatpush.msra.mxu0 %v2756
    %2764 = vmatpush.msra.mxu0 %v2755
    %2765 = vmatpush.msra.mxu0 %v2754
    %2766 = vmatpush.msra.mxu0 %v2753
    %2767 = vmatpush.msra.mxu0 %v2752
    %2768 = vmatpush.msra.mxu0 %v2751
    %2769 = vmatpush.msra.mxu0 %v2750
    %2770 = vmatpush.msra.mxu0 %v2749
    %2771 = vmatpush.msra.mxu0 %v2748
    %2772 = vmatpush.msra.mxu0 %v2747
    %2773 = vmatpush.msra.mxu0 %v2746
    %2774 = vmatpush.msra.mxu0 %v2745
    %2775 = vmatpush.msra.mxu0 %v2744
    %2776 = vmatmul.f32.gmra.mxu0 %v2554
    %v2777 = vpop.f32.mrf.mxu0
    %v2778 = vadd.f32 0.0, %v2777
    %2779 = vdwg.mxu0
    %v2780 = vadd.f32 %v2742, %v2778
    %s2781 = scalar_lea.vmem [#allocation7], 768
    %v2782 = vld [vmem:[%s2781] sm:$0xff]
    %v2783 = vld [vmem:[%s2781 + $0x8] sm:$0xff]
    %v2784 = vld [vmem:[%s2781 + $0x10] sm:$0xff]
    %v2785 = vld [vmem:[%s2781 + $0x18] sm:$0xff]
    %v2786 = vld [vmem:[%s2781 + $0x20] sm:$0xff]
    %v2787 = vld [vmem:[%s2781 + $0x28] sm:$0xff]
    %v2788 = vld [vmem:[%s2781 + $0x30] sm:$0xff]
    %v2789 = vld [vmem:[%s2781 + $0x38] sm:$0xff]
    %v2790 = vld [vmem:[%s2781 + $0x40] sm:$0xff]
    %v2791 = vld [vmem:[%s2781 + $0x48] sm:$0xff]
    %v2792 = vld [vmem:[%s2781 + $0x50] sm:$0xff]
    %v2793 = vld [vmem:[%s2781 + $0x58] sm:$0xff]
    %v2794 = vld [vmem:[%s2781 + $0x60] sm:$0xff]
    %v2795 = vld [vmem:[%s2781 + $0x68] sm:$0xff]
    %v2796 = vld [vmem:[%s2781 + $0x70] sm:$0xff]
    %v2797 = vld [vmem:[%s2781 + $0x78] sm:$0xff]
    %2798 = vmatpush.msra.mxu0 %v2797
    %2799 = vmatpush.msra.mxu0 %v2796
    %2800 = vmatpush.msra.mxu0 %v2795
    %2801 = vmatpush.msra.mxu0 %v2794
    %2802 = vmatpush.msra.mxu0 %v2793
    %2803 = vmatpush.msra.mxu0 %v2792
    %2804 = vmatpush.msra.mxu0 %v2791
    %2805 = vmatpush.msra.mxu0 %v2790
    %2806 = vmatpush.msra.mxu0 %v2789
    %2807 = vmatpush.msra.mxu0 %v2788
    %2808 = vmatpush.msra.mxu0 %v2787
    %2809 = vmatpush.msra.mxu0 %v2786
    %2810 = vmatpush.msra.mxu0 %v2785
    %2811 = vmatpush.msra.mxu0 %v2784
    %2812 = vmatpush.msra.mxu0 %v2783
    %2813 = vmatpush.msra.mxu0 %v2782
    %2814 = vmatmul.f32.gmra.mxu0 %v2555
    %v2815 = vpop.f32.mrf.mxu0
    %v2816 = vadd.f32 0.0, %v2815
    %2817 = vdwg.mxu0
    %v2818 = vadd.f32 %v2780, %v2816
    %v2819 = vld [vmem:[%s8] sm:$0x1]
    %v2821 = vperm.slane %v2819, 0
    %v2823 = vadd.f32 %v2818, %v2821
    %2824 = vst [vmem:[%s9] sm:$0xff] %v2823
    // Predicated region
    $region54: #{cnn_forward.1} parent=1 // pred_check
      _
    $region55: #{cnn_forward.1} parent=1 // pred_check_branch
      %2826 = sbr.rel (0) target = $region57
    $region56: #{cnn_forward.1} parent=1 // pred_region
      _
    $region57: #{cnn_forward.1} parent=1 // pred_fallthru
      _
    // Predicated region
    $region58: #{cnn_forward.1} parent=1 // pred_check
      _
    $region59: #{cnn_forward.1} parent=1 // pred_check_branch
      %2828 = sbr.rel (0) target = $region61
    $region60: #{cnn_forward.1} parent=1 // pred_region
      _
    $region61: #{cnn_forward.1} parent=1 // pred_fallthru
      _
    %2829 = vsyncpa [#allocation3], 1
    %2830 = vsyncpa [#allocation5], 1
    %2831 = vsyncpa [#allocation8], 1

</llo_original>
